<compile_context>
chip_gen: v5e
topology: v5e:2x2
jax: 0.10.0
libtpu: 0.0.40
codegen_flags: <defaults>
</compile_context>

<pallas_src>
import functools

import jax
import jax.numpy as jnp
from jax import lax
from jax.experimental import pallas as pl
from jax.experimental.pallas import tpu as pltpu


def _round_up(n, m):
    return ((n + m - 1) // m) * m


# ----------------------------------------------------------------------------
# Fused kernel: all GRU layers + fc1 -> ReLU -> fc2, single invocation (no grid)
# ----------------------------------------------------------------------------
def _fused_gru_mlp_kernel(num_layers, S, Bp, H, Gp, *refs):
    """refs layout:
      [0] x_ref    (S*Bp, In)      time-major, batch-padded, flattened input
      [1] h0_ref   (L, Bp, H)
      per layer l (4 refs each):
          wih_ref  (In_l, Gp)      gate-fused W_ih^T, lanes [0:3H]=(r|z|n), rest 0
          whh_ref  (H, Gp)         gate-fused W_hh^T
          bi_ref   (1, Gp)         b_ih with b_hr/b_hz folded in, rest 0
          bhn_ref  (1, Gp)         only lanes [2H:3H] carry b_hn, rest 0
      head: w1 (H, H), b1 (1, H), w2 (H, Op), b2 (1, Op)
      out:  o_ref (S*Bp, Op)
      scratch: gi_ref (S*Bp, Gp), hseq_ref (S*Bp, H)
    """
    x_ref, h0_ref = refs[0], refs[1]
    idx = 2
    layers = []
    for _ in range(num_layers):
        layers.append(refs[idx:idx + 4])
        idx += 4
    w1_ref, b1_ref, w2_ref, b2_ref = refs[idx:idx + 4]
    o_ref = refs[idx + 4]
    gi_ref = refs[idx + 5]
    hseq_ref = refs[idx + 6]

    for l, (wih_ref, whh_ref, bi_ref, bhn_ref) in enumerate(layers):
        # ---- bulk gate-fused input projection for ALL timesteps at once:
        #      one MXU matmul per layer, lane-dense (Gp-wide) store, biases
        #      (with b_hr/b_hz pre-folded) added once here, off the serial path.
        src = x_ref[...] if l == 0 else hseq_ref[...]
        gi_ref[...] = (
            jnp.dot(src, wih_ref[...], preferred_element_type=jnp.float32)
            + bi_ref[...])

        # ---- hoist recurrent weight + n-gate hidden bias out of the time loop
        whh = whh_ref[...]                                   # (H, Gp)
        bhn = jnp.broadcast_to(bhn_ref[...], (Bp, Gp))       # (Bp, Gp), hoisted

        # ---- sequential recurrence: ONE fused matmul per step ----
        def step(t, h_prev, whh=whh, bhn=bhn):
            off = pl.multiple_of(t * Bp, Bp)                 # tile-aligned offset
            gi_t = gi_ref[pl.ds(off, Bp), :]                 # (Bp, Gp), unmasked
            gh = jnp.dot(h_prev, whh,
                         preferred_element_type=jnp.float32) + bhn
            r = jax.nn.sigmoid(gi_t[:, 0:H] + gh[:, 0:H])
            z = jax.nn.sigmoid(gi_t[:, H:2 * H] + gh[:, H:2 * H])
            n = jnp.tanh(gi_t[:, 2 * H:3 * H] + r * gh[:, 2 * H:3 * H])
            h_new = (1.0 - z) * n + z * h_prev
            hseq_ref[pl.ds(off, Bp), :] = h_new
            return h_new

        lax.fori_loop(0, S, step, h0_ref[l], unroll=min(S, 8))
        # TODO(synk): nn.GRU inter-layer dropout applies only in training mode;
        # eval => identity, so nothing is done here.

    # ---- head: fc1 -> ReLU -> (dropout, identity in eval) -> fc2 ----
    hid = hseq_ref[...]                                       # (S*Bp, H)
    a = jnp.dot(hid, w1_ref[...],
                preferred_element_type=jnp.float32) + b1_ref[...]
    a = jnp.maximum(a, 0.0)
    # Lane-dense (Op = 128-wide) output store; padding columns are zero.
    o_ref[...] = jnp.dot(a, w2_ref[...],
                         preferred_element_type=jnp.float32) + b2_ref[...]


# ----------------------------------------------------------------------------
# Full model forward (eval mode)
# ----------------------------------------------------------------------------
def gru_model_forward(x, params):
    """x: (batch, seq, input_size) -> (batch, seq, output_size)"""
    B, S, In = x.shape
    h0 = params["h0"]                       # (num_layers, 1, H)
    L, _, H = h0.shape
    O = params["fc2_w"].shape[0]

    Bp = _round_up(B, 8)                    # batch padded to 8 sublanes
    Gp = _round_up(3 * H, 128)              # gate-fused lane width (r|z|n + pad)
    Op = _round_up(O, 128)                  # lane-dense output width

    # Time-major, batch-padded, flattened input: row t*Bp + b  ->  x[b, t, :]
    x_tm = jnp.transpose(x, (1, 0, 2)).astype(jnp.float32)    # (S, B, In)
    if Bp != B:
        x_tm = jnp.pad(x_tm, ((0, 0), (0, Bp - B), (0, 0)))
    x_flat = x_tm.reshape(S * Bp, In)

    h0_b = jnp.broadcast_to(h0, (L, Bp, H)).astype(jnp.float32)

    inputs = [x_flat, h0_b]
    in_specs = [
        pl.BlockSpec((S * Bp, In), lambda: (0, 0)),
        pl.BlockSpec((L, Bp, H), lambda: (0, 0, 0)),
    ]

    for lp in params["gru_layers"]:
        w_ih = lp["w_ih"]                   # (3H, In_l)  gates stacked (r, z, n)
        w_hh = lp["w_hh"]                   # (3H, H)
        b_ih = lp["b_ih"]                   # (3H,)
        b_hh = lp["b_hh"]                   # (3H,)
        In_l = w_ih.shape[1]

        # Gate-fused, transposed, lane-padded weights.
        wih_all = jnp.zeros((In_l, Gp), jnp.float32).at[:, :3 * H].set(w_ih.T)
        whh_all = jnp.zeros((H, Gp), jnp.float32).at[:, :3 * H].set(w_hh.T)
        # Fold the r/z hidden biases into the input bias (exact); b_hn must stay
        # inside r * (W_hn h + b_hn), so it gets its own (mostly zero) vector.
        bi_fold = b_ih.at[:2 * H].add(b_hh[:2 * H])
        bi_all = jnp.zeros((1, Gp), jnp.float32).at[0, :3 * H].set(bi_fold)
        bhn_all = jnp.zeros((1, Gp), jnp.float32).at[0, 2 * H:3 * H].set(
            b_hh[2 * H:])

        inputs += [wih_all, whh_all, bi_all, bhn_all]
        in_specs += [
            pl.BlockSpec((In_l, Gp), lambda: (0, 0)),
            pl.BlockSpec((H, Gp), lambda: (0, 0)),
            pl.BlockSpec((1, Gp), lambda: (0, 0)),
            pl.BlockSpec((1, Gp), lambda: (0, 0)),
        ]

    w1 = params["fc1_w"].T.astype(jnp.float32)                         # (H, H)
    b1 = params["fc1_b"].reshape(1, H).astype(jnp.float32)
    w2 = jnp.zeros((H, Op), jnp.float32).at[:, :O].set(params["fc2_w"].T)
    b2 = jnp.zeros((1, Op), jnp.float32).at[0, :O].set(params["fc2_b"])
    inputs += [w1, b1, w2, b2]
    in_specs += [
        pl.BlockSpec((H, H), lambda: (0, 0)),
        pl.BlockSpec((1, H), lambda: (0, 0)),
        pl.BlockSpec((H, Op), lambda: (0, 0)),
        pl.BlockSpec((1, Op), lambda: (0, 0)),
    ]

    kernel = functools.partial(_fused_gru_mlp_kernel, L, S, Bp, H, Gp)

    # Explicit VMEM budget (v5e scoped default is only 16 MiB); clamp to the
    # v7x-safe 64 MiB physical ceiling.
    def _padded_bytes(shape):
        rows = 1
        for d in shape[:-2]:
            rows *= d
        rows *= _round_up(shape[-2], 8)
        return 4 * rows * _round_up(shape[-1], 128)

    est = sum(_padded_bytes(a.shape) for a in inputs)
    est += _padded_bytes((S * Bp, Gp)) + _padded_bytes((S * Bp, H))  # scratches
    est += _padded_bytes((S * Bp, Op))                               # output
    vmem_limit = int(min(max(2 * est + (4 << 20), 32 << 20), 64 << 20))
    # TODO(synk): for large S on v7x/v5e, time-chunk the gi scratch (emit_pipeline)
    # and, on v7x, split the padded batch over the 2 TensorCores via a leading
    # "parallel" grid axis; unnecessary at these sizes.

    out_flat = pl.pallas_call(
        kernel,
        out_shape=jax.ShapeDtypeStruct((S * Bp, Op), jnp.float32),
        in_specs=in_specs,
        out_specs=pl.BlockSpec((S * Bp, Op), lambda: (0, 0)),
        scratch_shapes=[
            pltpu.VMEM((S * Bp, Gp), jnp.float32),   # gate-fused input projections
            pltpu.VMEM((S * Bp, H), jnp.float32),    # hidden-state sequence
        ],
        compiler_params=pltpu.CompilerParams(vmem_limit_bytes=vmem_limit),
    )(*inputs)

    # Slice off lane padding + batch padding, back to batch-first.
    out = out_flat.reshape(S, Bp, Op)[:, :B, :O]
    return jnp.transpose(out, (1, 0, 2))               # (B, S, O)


# ----------------------------------------------------------------------------
# Deterministic parameter initialization (matches PyTorch shapes)
# ----------------------------------------------------------------------------
def init_params(key, hidden_size, num_layers, output_size, input_size):
    k = 1.0 / jnp.sqrt(hidden_size)
    keys = jax.random.split(key, 4 * num_layers + 5)
    ki = iter(keys)

    gru_layers = []
    for l in range(num_layers):
        in_dim = input_size if l == 0 else hidden_size
        gru_layers.append(dict(
            w_ih=jax.random.uniform(next(ki), (3 * hidden_size, in_dim),
                                    minval=-k, maxval=k, dtype=jnp.float32),
            w_hh=jax.random.uniform(next(ki), (3 * hidden_size, hidden_size),
                                    minval=-k, maxval=k, dtype=jnp.float32),
            b_ih=jax.random.uniform(next(ki), (3 * hidden_size,),
                                    minval=-k, maxval=k, dtype=jnp.float32),
            b_hh=jax.random.uniform(next(ki), (3 * hidden_size,),
                                    minval=-k, maxval=k, dtype=jnp.float32),
        ))

    params = dict(
        gru_layers=gru_layers,
        fc1_w=jax.random.uniform(next(ki), (hidden_size, hidden_size),
                                 minval=-k, maxval=k, dtype=jnp.float32),
        fc1_b=jax.random.uniform(next(ki), (hidden_size,),
                                 minval=-k, maxval=k, dtype=jnp.float32),
        fc2_w=jax.random.uniform(next(ki), (output_size, hidden_size),
                                 minval=-k, maxval=k, dtype=jnp.float32),
        fc2_b=jax.random.uniform(next(ki), (output_size,),
                                 minval=-k, maxval=k, dtype=jnp.float32),
        h0=jax.random.normal(next(ki), (num_layers, 1, hidden_size),
                             dtype=jnp.float32),
    )
    return params


if __name__ == "__main__":
    hidden_size = 32
    num_layers = 2
    output_size = 8
    input_size = 128
    batch = 2
    seq = 8

    key = jax.random.PRNGKey(0)
    pkey, xkey = jax.random.split(key)
    params = init_params(pkey, hidden_size, num_layers, output_size, input_size)
    x = jax.random.normal(xkey, (batch, seq, input_size), dtype=jnp.float32)

    fwd = jax.jit(gru_model_forward)
    out = fwd(x, params)
    jax.block_until_ready(out)
    assert out.shape == (batch, seq, output_size)
    print("KERNEL_OK")
</pallas_src>

<mosaic_0001>
module attributes {stable_mosaic.version = 11 : i64} {
  func.func @_fused_gru_mlp_kernel(%arg0: memref<64x128xf32, #tpu.memory_space<vmem>>, %arg1: memref<2x8x32xf32, #tpu.memory_space<vmem>>, %arg2: memref<128x128xf32, #tpu.memory_space<vmem>>, %arg3: memref<32x128xf32, #tpu.memory_space<vmem>>, %arg4: memref<1x128xf32, #tpu.memory_space<vmem>>, %arg5: memref<1x128xf32, #tpu.memory_space<vmem>>, %arg6: memref<32x128xf32, #tpu.memory_space<vmem>>, %arg7: memref<32x128xf32, #tpu.memory_space<vmem>>, %arg8: memref<1x128xf32, #tpu.memory_space<vmem>>, %arg9: memref<1x128xf32, #tpu.memory_space<vmem>>, %arg10: memref<32x32xf32, #tpu.memory_space<vmem>>, %arg11: memref<1x32xf32, #tpu.memory_space<vmem>>, %arg12: memref<32x128xf32, #tpu.memory_space<vmem>>, %arg13: memref<1x128xf32, #tpu.memory_space<vmem>>, %arg14: memref<64x128xf32, #tpu.memory_space<vmem>>, %arg15: memref<64x128xf32, #tpu.memory_space<vmem>>, %arg16: memref<64x32xf32, #tpu.memory_space<vmem>>) attributes {dimension_semantics = [], scalar_prefetch = 0 : i64, scratch_operands = 2 : i64, tpu.core_type = #tpu.core_type<tc>} {
    %c0 = arith.constant 0 : index
    %c0_0 = arith.constant 0 : index
    %0 = vector.load %arg0[%c0, %c0_0] : memref<64x128xf32, #tpu.memory_space<vmem>>, vector<64x128xf32>
    %c0_1 = arith.constant 0 : index
    %c0_2 = arith.constant 0 : index
    %1 = vector.load %arg2[%c0_1, %c0_2] : memref<128x128xf32, #tpu.memory_space<vmem>>, vector<128x128xf32>
    %cst = arith.constant dense<0.000000e+00> : vector<64x128xf32>
    %2 = tpu.matmul %0, %1, %cst {dimension_numbers = #tpu.dot_dimension_numbers<[1], [0], [0], [1], [0, 0, 1, 1], [], []>} : vector<64x128xf32>, vector<128x128xf32>, vector<64x128xf32> -> vector<64x128xf32>
    %c0_3 = arith.constant 0 : index
    %c0_4 = arith.constant 0 : index
    %3 = vector.load %arg4[%c0_3, %c0_4] : memref<1x128xf32, #tpu.memory_space<vmem>>, vector<1x128xf32>
    %4 = vector.broadcast %3 : vector<1x128xf32> to vector<64x128xf32>
    %5 = arith.addf %2, %4 : vector<64x128xf32>
    %c0_5 = arith.constant 0 : index
    %c0_6 = arith.constant 0 : index
    %6 = vector.load %arg15[%c0_5, %c0_6] : memref<64x128xf32, #tpu.memory_space<vmem>>, vector<64x128xf32>
    tpu.vector_store %arg15[%c0_5, %c0_6], %5 {strides = array<i32>} : memref<64x128xf32, #tpu.memory_space<vmem>>, vector<64x128xf32>,
    %c0_7 = arith.constant 0 : index
    %c0_8 = arith.constant 0 : index
    %7 = vector.load %arg3[%c0_7, %c0_8] : memref<32x128xf32, #tpu.memory_space<vmem>>, vector<32x128xf32>
    %c0_9 = arith.constant 0 : index
    %c0_10 = arith.constant 0 : index
    %8 = vector.load %arg5[%c0_9, %c0_10] : memref<1x128xf32, #tpu.memory_space<vmem>>, vector<1x128xf32>
    %9 = vector.shape_cast %8 : vector<1x128xf32> to vector<1x128xf32>
    %10 = vector.broadcast %9 : vector<1x128xf32> to vector<8x128xf32>
    %c0_11 = arith.constant 0 : index
    %c0_12 = arith.constant 0 : index
    %c0_13 = arith.constant 0 : index
    %11 = vector.load %arg1[%c0_11, %c0_12, %c0_13] : memref<2x8x32xf32, #tpu.memory_space<vmem>>, vector<1x8x32xf32>
    %12 = vector.shape_cast %11 : vector<1x8x32xf32> to vector<8x32xf32>
    %c0_i32 = arith.constant 0 : i32
    %c8_i32 = arith.constant 8 : i32
    %13 = arith.muli %c0_i32, %c8_i32 : i32
    %14 = tpu.assume_multiple %13, 8 : i32
    %15 = arith.index_cast %14 : i32 to index
    %c0_14 = arith.constant 0 : index
    %16 = vector.load %arg15[%15, %c0_14] : memref<64x128xf32, #tpu.memory_space<vmem>>, vector<8x128xf32>
    %cst_15 = arith.constant dense<0.000000e+00> : vector<8x128xf32>
    %17 = tpu.matmul %12, %7, %cst_15 {dimension_numbers = #tpu.dot_dimension_numbers<[1], [0], [0], [1], [0, 0, 1, 1], [], []>} : vector<8x32xf32>, vector<32x128xf32>, vector<8x128xf32> -> vector<8x128xf32>
    %18 = arith.addf %17, %10 : vector<8x128xf32>
    %19 = vector.extract_strided_slice %16 {offsets = [0, 0], sizes = [8, 32], strides = [1, 1]} : vector<8x128xf32> to vector<8x32xf32>
    %20 = vector.extract_strided_slice %18 {offsets = [0, 0], sizes = [8, 32], strides = [1, 1]} : vector<8x128xf32> to vector<8x32xf32>
    %21 = arith.addf %19, %20 : vector<8x32xf32>
    %22 = arith.negf %21 : vector<8x32xf32>
    %23 = math.exp %22 : vector<8x32xf32>
    %cst_16 = arith.constant 1.000000e+00 : f32
    %24 = vector.broadcast %cst_16 : f32 to vector<8x32xf32>
    %25 = arith.addf %24, %23 : vector<8x32xf32>
    %26 = arith.divf %24, %25 : vector<8x32xf32>
    %27 = vector.extract_strided_slice %16 {offsets = [0, 32], sizes = [8, 32], strides = [1, 1]} : vector<8x128xf32> to vector<8x32xf32>
    %28 = vector.extract_strided_slice %18 {offsets = [0, 32], sizes = [8, 32], strides = [1, 1]} : vector<8x128xf32> to vector<8x32xf32>
    %29 = arith.addf %27, %28 : vector<8x32xf32>
    %30 = arith.negf %29 : vector<8x32xf32>
    %31 = math.exp %30 : vector<8x32xf32>
    %cst_17 = arith.constant 1.000000e+00 : f32
    %32 = vector.broadcast %cst_17 : f32 to vector<8x32xf32>
    %33 = arith.addf %32, %31 : vector<8x32xf32>
    %34 = arith.divf %32, %33 : vector<8x32xf32>
    %35 = vector.extract_strided_slice %16 {offsets = [0, 64], sizes = [8, 32], strides = [1, 1]} : vector<8x128xf32> to vector<8x32xf32>
    %36 = vector.extract_strided_slice %18 {offsets = [0, 64], sizes = [8, 32], strides = [1, 1]} : vector<8x128xf32> to vector<8x32xf32>
    %37 = arith.mulf %26, %36 : vector<8x32xf32>
    %38 = arith.addf %35, %37 : vector<8x32xf32>
    %39 = math.tanh %38 : vector<8x32xf32>
    %cst_18 = arith.constant 1.000000e+00 : f32
    %40 = vector.broadcast %cst_18 : f32 to vector<8x32xf32>
    %41 = arith.subf %40, %34 : vector<8x32xf32>
    %42 = arith.mulf %41, %39 : vector<8x32xf32>
    %43 = arith.mulf %34, %12 : vector<8x32xf32>
    %44 = arith.addf %42, %43 : vector<8x32xf32>
    %45 = arith.index_cast %14 : i32 to index
    %c0_19 = arith.constant 0 : index
    %46 = vector.load %arg16[%45, %c0_19] : memref<64x32xf32, #tpu.memory_space<vmem>>, vector<8x32xf32>
    tpu.vector_store %arg16[%45, %c0_19], %44 {strides = array<i32>} : memref<64x32xf32, #tpu.memory_space<vmem>>, vector<8x32xf32>,
    %c1_i32 = arith.constant 1 : i32
    %c8_i32_20 = arith.constant 8 : i32
    %47 = arith.muli %c1_i32, %c8_i32_20 : i32
    %48 = tpu.assume_multiple %47, 8 : i32
    %49 = arith.index_cast %48 : i32 to index
    %c0_21 = arith.constant 0 : index
    %50 = vector.load %arg15[%49, %c0_21] : memref<64x128xf32, #tpu.memory_space<vmem>>, vector<8x128xf32>
    %cst_22 = arith.constant dense<0.000000e+00> : vector<8x128xf32>
    %51 = tpu.matmul %44, %7, %cst_22 {dimension_numbers = #tpu.dot_dimension_numbers<[1], [0], [0], [1], [0, 0, 1, 1], [], []>} : vector<8x32xf32>, vector<32x128xf32>, vector<8x128xf32> -> vector<8x128xf32>
    %52 = arith.addf %51, %10 : vector<8x128xf32>
    %53 = vector.extract_strided_slice %50 {offsets = [0, 0], sizes = [8, 32], strides = [1, 1]} : vector<8x128xf32> to vector<8x32xf32>
    %54 = vector.extract_strided_slice %52 {offsets = [0, 0], sizes = [8, 32], strides = [1, 1]} : vector<8x128xf32> to vector<8x32xf32>
    %55 = arith.addf %53, %54 : vector<8x32xf32>
    %56 = arith.negf %55 : vector<8x32xf32>
    %57 = math.exp %56 : vector<8x32xf32>
    %cst_23 = arith.constant 1.000000e+00 : f32
    %58 = vector.broadcast %cst_23 : f32 to vector<8x32xf32>
    %59 = arith.addf %58, %57 : vector<8x32xf32>
    %60 = arith.divf %58, %59 : vector<8x32xf32>
    %61 = vector.extract_strided_slice %50 {offsets = [0, 32], sizes = [8, 32], strides = [1, 1]} : vector<8x128xf32> to vector<8x32xf32>
    %62 = vector.extract_strided_slice %52 {offsets = [0, 32], sizes = [8, 32], strides = [1, 1]} : vector<8x128xf32> to vector<8x32xf32>
    %63 = arith.addf %61, %62 : vector<8x32xf32>
    %64 = arith.negf %63 : vector<8x32xf32>
    %65 = math.exp %64 : vector<8x32xf32>
    %cst_24 = arith.constant 1.000000e+00 : f32
    %66 = vector.broadcast %cst_24 : f32 to vector<8x32xf32>
    %67 = arith.addf %66, %65 : vector<8x32xf32>
    %68 = arith.divf %66, %67 : vector<8x32xf32>
    %69 = vector.extract_strided_slice %50 {offsets = [0, 64], sizes = [8, 32], strides = [1, 1]} : vector<8x128xf32> to vector<8x32xf32>
    %70 = vector.extract_strided_slice %52 {offsets = [0, 64], sizes = [8, 32], strides = [1, 1]} : vector<8x128xf32> to vector<8x32xf32>
    %71 = arith.mulf %60, %70 : vector<8x32xf32>
    %72 = arith.addf %69, %71 : vector<8x32xf32>
    %73 = math.tanh %72 : vector<8x32xf32>
    %cst_25 = arith.constant 1.000000e+00 : f32
    %74 = vector.broadcast %cst_25 : f32 to vector<8x32xf32>
    %75 = arith.subf %74, %68 : vector<8x32xf32>
    %76 = arith.mulf %75, %73 : vector<8x32xf32>
    %77 = arith.mulf %68, %44 : vector<8x32xf32>
    %78 = arith.addf %76, %77 : vector<8x32xf32>
    %79 = arith.index_cast %48 : i32 to index
    %c0_26 = arith.constant 0 : index
    %80 = vector.load %arg16[%79, %c0_26] : memref<64x32xf32, #tpu.memory_space<vmem>>, vector<8x32xf32>
    tpu.vector_store %arg16[%79, %c0_26], %78 {strides = array<i32>} : memref<64x32xf32, #tpu.memory_space<vmem>>, vector<8x32xf32>,
    %c2_i32 = arith.constant 2 : i32
    %c8_i32_27 = arith.constant 8 : i32
    %81 = arith.muli %c2_i32, %c8_i32_27 : i32
    %82 = tpu.assume_multiple %81, 8 : i32
    %83 = arith.index_cast %82 : i32 to index
    %c0_28 = arith.constant 0 : index
    %84 = vector.load %arg15[%83, %c0_28] : memref<64x128xf32, #tpu.memory_space<vmem>>, vector<8x128xf32>
    %cst_29 = arith.constant dense<0.000000e+00> : vector<8x128xf32>
    %85 = tpu.matmul %78, %7, %cst_29 {dimension_numbers = #tpu.dot_dimension_numbers<[1], [0], [0], [1], [0, 0, 1, 1], [], []>} : vector<8x32xf32>, vector<32x128xf32>, vector<8x128xf32> -> vector<8x128xf32>
    %86 = arith.addf %85, %10 : vector<8x128xf32>
    %87 = vector.extract_strided_slice %84 {offsets = [0, 0], sizes = [8, 32], strides = [1, 1]} : vector<8x128xf32> to vector<8x32xf32>
    %88 = vector.extract_strided_slice %86 {offsets = [0, 0], sizes = [8, 32], strides = [1, 1]} : vector<8x128xf32> to vector<8x32xf32>
    %89 = arith.addf %87, %88 : vector<8x32xf32>
    %90 = arith.negf %89 : vector<8x32xf32>
    %91 = math.exp %90 : vector<8x32xf32>
    %cst_30 = arith.constant 1.000000e+00 : f32
    %92 = vector.broadcast %cst_30 : f32 to vector<8x32xf32>
    %93 = arith.addf %92, %91 : vector<8x32xf32>
    %94 = arith.divf %92, %93 : vector<8x32xf32>
    %95 = vector.extract_strided_slice %84 {offsets = [0, 32], sizes = [8, 32], strides = [1, 1]} : vector<8x128xf32> to vector<8x32xf32>
    %96 = vector.extract_strided_slice %86 {offsets = [0, 32], sizes = [8, 32], strides = [1, 1]} : vector<8x128xf32> to vector<8x32xf32>
    %97 = arith.addf %95, %96 : vector<8x32xf32>
    %98 = arith.negf %97 : vector<8x32xf32>
    %99 = math.exp %98 : vector<8x32xf32>
    %cst_31 = arith.constant 1.000000e+00 : f32
    %100 = vector.broadcast %cst_31 : f32 to vector<8x32xf32>
    %101 = arith.addf %100, %99 : vector<8x32xf32>
    %102 = arith.divf %100, %101 : vector<8x32xf32>
    %103 = vector.extract_strided_slice %84 {offsets = [0, 64], sizes = [8, 32], strides = [1, 1]} : vector<8x128xf32> to vector<8x32xf32>
    %104 = vector.extract_strided_slice %86 {offsets = [0, 64], sizes = [8, 32], strides = [1, 1]} : vector<8x128xf32> to vector<8x32xf32>
    %105 = arith.mulf %94, %104 : vector<8x32xf32>
    %106 = arith.addf %103, %105 : vector<8x32xf32>
    %107 = math.tanh %106 : vector<8x32xf32>
    %cst_32 = arith.constant 1.000000e+00 : f32
    %108 = vector.broadcast %cst_32 : f32 to vector<8x32xf32>
    %109 = arith.subf %108, %102 : vector<8x32xf32>
    %110 = arith.mulf %109, %107 : vector<8x32xf32>
    %111 = arith.mulf %102, %78 : vector<8x32xf32>
    %112 = arith.addf %110, %111 : vector<8x32xf32>
    %113 = arith.index_cast %82 : i32 to index
    %c0_33 = arith.constant 0 : index
    %114 = vector.load %arg16[%113, %c0_33] : memref<64x32xf32, #tpu.memory_space<vmem>>, vector<8x32xf32>
    tpu.vector_store %arg16[%113, %c0_33], %112 {strides = array<i32>} : memref<64x32xf32, #tpu.memory_space<vmem>>, vector<8x32xf32>,
    %c3_i32 = arith.constant 3 : i32
    %c8_i32_34 = arith.constant 8 : i32
    %115 = arith.muli %c3_i32, %c8_i32_34 : i32
    %116 = tpu.assume_multiple %115, 8 : i32
    %117 = arith.index_cast %116 : i32 to index
    %c0_35 = arith.constant 0 : index
    %118 = vector.load %arg15[%117, %c0_35] : memref<64x128xf32, #tpu.memory_space<vmem>>, vector<8x128xf32>
    %cst_36 = arith.constant dense<0.000000e+00> : vector<8x128xf32>
    %119 = tpu.matmul %112, %7, %cst_36 {dimension_numbers = #tpu.dot_dimension_numbers<[1], [0], [0], [1], [0, 0, 1, 1], [], []>} : vector<8x32xf32>, vector<32x128xf32>, vector<8x128xf32> -> vector<8x128xf32>
    %120 = arith.addf %119, %10 : vector<8x128xf32>
    %121 = vector.extract_strided_slice %118 {offsets = [0, 0], sizes = [8, 32], strides = [1, 1]} : vector<8x128xf32> to vector<8x32xf32>
    %122 = vector.extract_strided_slice %120 {offsets = [0, 0], sizes = [8, 32], strides = [1, 1]} : vector<8x128xf32> to vector<8x32xf32>
    %123 = arith.addf %121, %122 : vector<8x32xf32>
    %124 = arith.negf %123 : vector<8x32xf32>
    %125 = math.exp %124 : vector<8x32xf32>
    %cst_37 = arith.constant 1.000000e+00 : f32
    %126 = vector.broadcast %cst_37 : f32 to vector<8x32xf32>
    %127 = arith.addf %126, %125 : vector<8x32xf32>
    %128 = arith.divf %126, %127 : vector<8x32xf32>
    %129 = vector.extract_strided_slice %118 {offsets = [0, 32], sizes = [8, 32], strides = [1, 1]} : vector<8x128xf32> to vector<8x32xf32>
    %130 = vector.extract_strided_slice %120 {offsets = [0, 32], sizes = [8, 32], strides = [1, 1]} : vector<8x128xf32> to vector<8x32xf32>
    %131 = arith.addf %129, %130 : vector<8x32xf32>
    %132 = arith.negf %131 : vector<8x32xf32>
    %133 = math.exp %132 : vector<8x32xf32>
    %cst_38 = arith.constant 1.000000e+00 : f32
    %134 = vector.broadcast %cst_38 : f32 to vector<8x32xf32>
    %135 = arith.addf %134, %133 : vector<8x32xf32>
    %136 = arith.divf %134, %135 : vector<8x32xf32>
    %137 = vector.extract_strided_slice %118 {offsets = [0, 64], sizes = [8, 32], strides = [1, 1]} : vector<8x128xf32> to vector<8x32xf32>
    %138 = vector.extract_strided_slice %120 {offsets = [0, 64], sizes = [8, 32], strides = [1, 1]} : vector<8x128xf32> to vector<8x32xf32>
    %139 = arith.mulf %128, %138 : vector<8x32xf32>
    %140 = arith.addf %137, %139 : vector<8x32xf32>
    %141 = math.tanh %140 : vector<8x32xf32>
    %cst_39 = arith.constant 1.000000e+00 : f32
    %142 = vector.broadcast %cst_39 : f32 to vector<8x32xf32>
    %143 = arith.subf %142, %136 : vector<8x32xf32>
    %144 = arith.mulf %143, %141 : vector<8x32xf32>
    %145 = arith.mulf %136, %112 : vector<8x32xf32>
    %146 = arith.addf %144, %145 : vector<8x32xf32>
    %147 = arith.index_cast %116 : i32 to index
    %c0_40 = arith.constant 0 : index
    %148 = vector.load %arg16[%147, %c0_40] : memref<64x32xf32, #tpu.memory_space<vmem>>, vector<8x32xf32>
    tpu.vector_store %arg16[%147, %c0_40], %146 {strides = array<i32>} : memref<64x32xf32, #tpu.memory_space<vmem>>, vector<8x32xf32>,
    %c4_i32 = arith.constant 4 : i32
    %c8_i32_41 = arith.constant 8 : i32
    %149 = arith.muli %c4_i32, %c8_i32_41 : i32
    %150 = tpu.assume_multiple %149, 8 : i32
    %151 = arith.index_cast %150 : i32 to index
    %c0_42 = arith.constant 0 : index
    %152 = vector.load %arg15[%151, %c0_42] : memref<64x128xf32, #tpu.memory_space<vmem>>, vector<8x128xf32>
    %cst_43 = arith.constant dense<0.000000e+00> : vector<8x128xf32>
    %153 = tpu.matmul %146, %7, %cst_43 {dimension_numbers = #tpu.dot_dimension_numbers<[1], [0], [0], [1], [0, 0, 1, 1], [], []>} : vector<8x32xf32>, vector<32x128xf32>, vector<8x128xf32> -> vector<8x128xf32>
    %154 = arith.addf %153, %10 : vector<8x128xf32>
    %155 = vector.extract_strided_slice %152 {offsets = [0, 0], sizes = [8, 32], strides = [1, 1]} : vector<8x128xf32> to vector<8x32xf32>
    %156 = vector.extract_strided_slice %154 {offsets = [0, 0], sizes = [8, 32], strides = [1, 1]} : vector<8x128xf32> to vector<8x32xf32>
    %157 = arith.addf %155, %156 : vector<8x32xf32>
    %158 = arith.negf %157 : vector<8x32xf32>
    %159 = math.exp %158 : vector<8x32xf32>
    %cst_44 = arith.constant 1.000000e+00 : f32
    %160 = vector.broadcast %cst_44 : f32 to vector<8x32xf32>
    %161 = arith.addf %160, %159 : vector<8x32xf32>
    %162 = arith.divf %160, %161 : vector<8x32xf32>
    %163 = vector.extract_strided_slice %152 {offsets = [0, 32], sizes = [8, 32], strides = [1, 1]} : vector<8x128xf32> to vector<8x32xf32>
    %164 = vector.extract_strided_slice %154 {offsets = [0, 32], sizes = [8, 32], strides = [1, 1]} : vector<8x128xf32> to vector<8x32xf32>
    %165 = arith.addf %163, %164 : vector<8x32xf32>
    %166 = arith.negf %165 : vector<8x32xf32>
    %167 = math.exp %166 : vector<8x32xf32>
    %cst_45 = arith.constant 1.000000e+00 : f32
    %168 = vector.broadcast %cst_45 : f32 to vector<8x32xf32>
    %169 = arith.addf %168, %167 : vector<8x32xf32>
    %170 = arith.divf %168, %169 : vector<8x32xf32>
    %171 = vector.extract_strided_slice %152 {offsets = [0, 64], sizes = [8, 32], strides = [1, 1]} : vector<8x128xf32> to vector<8x32xf32>
    %172 = vector.extract_strided_slice %154 {offsets = [0, 64], sizes = [8, 32], strides = [1, 1]} : vector<8x128xf32> to vector<8x32xf32>
    %173 = arith.mulf %162, %172 : vector<8x32xf32>
    %174 = arith.addf %171, %173 : vector<8x32xf32>
    %175 = math.tanh %174 : vector<8x32xf32>
    %cst_46 = arith.constant 1.000000e+00 : f32
    %176 = vector.broadcast %cst_46 : f32 to vector<8x32xf32>
    %177 = arith.subf %176, %170 : vector<8x32xf32>
    %178 = arith.mulf %177, %175 : vector<8x32xf32>
    %179 = arith.mulf %170, %146 : vector<8x32xf32>
    %180 = arith.addf %178, %179 : vector<8x32xf32>
    %181 = arith.index_cast %150 : i32 to index
    %c0_47 = arith.constant 0 : index
    %182 = vector.load %arg16[%181, %c0_47] : memref<64x32xf32, #tpu.memory_space<vmem>>, vector<8x32xf32>
    tpu.vector_store %arg16[%181, %c0_47], %180 {strides = array<i32>} : memref<64x32xf32, #tpu.memory_space<vmem>>, vector<8x32xf32>,
    %c5_i32 = arith.constant 5 : i32
    %c8_i32_48 = arith.constant 8 : i32
    %183 = arith.muli %c5_i32, %c8_i32_48 : i32
    %184 = tpu.assume_multiple %183, 8 : i32
    %185 = arith.index_cast %184 : i32 to index
    %c0_49 = arith.constant 0 : index
    %186 = vector.load %arg15[%185, %c0_49] : memref<64x128xf32, #tpu.memory_space<vmem>>, vector<8x128xf32>
    %cst_50 = arith.constant dense<0.000000e+00> : vector<8x128xf32>
    %187 = tpu.matmul %180, %7, %cst_50 {dimension_numbers = #tpu.dot_dimension_numbers<[1], [0], [0], [1], [0, 0, 1, 1], [], []>} : vector<8x32xf32>, vector<32x128xf32>, vector<8x128xf32> -> vector<8x128xf32>
    %188 = arith.addf %187, %10 : vector<8x128xf32>
    %189 = vector.extract_strided_slice %186 {offsets = [0, 0], sizes = [8, 32], strides = [1, 1]} : vector<8x128xf32> to vector<8x32xf32>
    %190 = vector.extract_strided_slice %188 {offsets = [0, 0], sizes = [8, 32], strides = [1, 1]} : vector<8x128xf32> to vector<8x32xf32>
    %191 = arith.addf %189, %190 : vector<8x32xf32>
    %192 = arith.negf %191 : vector<8x32xf32>
    %193 = math.exp %192 : vector<8x32xf32>
    %cst_51 = arith.constant 1.000000e+00 : f32
    %194 = vector.broadcast %cst_51 : f32 to vector<8x32xf32>
    %195 = arith.addf %194, %193 : vector<8x32xf32>
    %196 = arith.divf %194, %195 : vector<8x32xf32>
    %197 = vector.extract_strided_slice %186 {offsets = [0, 32], sizes = [8, 32], strides = [1, 1]} : vector<8x128xf32> to vector<8x32xf32>
    %198 = vector.extract_strided_slice %188 {offsets = [0, 32], sizes = [8, 32], strides = [1, 1]} : vector<8x128xf32> to vector<8x32xf32>
    %199 = arith.addf %197, %198 : vector<8x32xf32>
    %200 = arith.negf %199 : vector<8x32xf32>
    %201 = math.exp %200 : vector<8x32xf32>
    %cst_52 = arith.constant 1.000000e+00 : f32
    %202 = vector.broadcast %cst_52 : f32 to vector<8x32xf32>
    %203 = arith.addf %202, %201 : vector<8x32xf32>
    %204 = arith.divf %202, %203 : vector<8x32xf32>
    %205 = vector.extract_strided_slice %186 {offsets = [0, 64], sizes = [8, 32], strides = [1, 1]} : vector<8x128xf32> to vector<8x32xf32>
    %206 = vector.extract_strided_slice %188 {offsets = [0, 64], sizes = [8, 32], strides = [1, 1]} : vector<8x128xf32> to vector<8x32xf32>
    %207 = arith.mulf %196, %206 : vector<8x32xf32>
    %208 = arith.addf %205, %207 : vector<8x32xf32>
    %209 = math.tanh %208 : vector<8x32xf32>
    %cst_53 = arith.constant 1.000000e+00 : f32
    %210 = vector.broadcast %cst_53 : f32 to vector<8x32xf32>
    %211 = arith.subf %210, %204 : vector<8x32xf32>
    %212 = arith.mulf %211, %209 : vector<8x32xf32>
    %213 = arith.mulf %204, %180 : vector<8x32xf32>
    %214 = arith.addf %212, %213 : vector<8x32xf32>
    %215 = arith.index_cast %184 : i32 to index
    %c0_54 = arith.constant 0 : index
    %216 = vector.load %arg16[%215, %c0_54] : memref<64x32xf32, #tpu.memory_space<vmem>>, vector<8x32xf32>
    tpu.vector_store %arg16[%215, %c0_54], %214 {strides = array<i32>} : memref<64x32xf32, #tpu.memory_space<vmem>>, vector<8x32xf32>,
    %c6_i32 = arith.constant 6 : i32
    %c8_i32_55 = arith.constant 8 : i32
    %217 = arith.muli %c6_i32, %c8_i32_55 : i32
    %218 = tpu.assume_multiple %217, 8 : i32
    %219 = arith.index_cast %218 : i32 to index
    %c0_56 = arith.constant 0 : index
    %220 = vector.load %arg15[%219, %c0_56] : memref<64x128xf32, #tpu.memory_space<vmem>>, vector<8x128xf32>
    %cst_57 = arith.constant dense<0.000000e+00> : vector<8x128xf32>
    %221 = tpu.matmul %214, %7, %cst_57 {dimension_numbers = #tpu.dot_dimension_numbers<[1], [0], [0], [1], [0, 0, 1, 1], [], []>} : vector<8x32xf32>, vector<32x128xf32>, vector<8x128xf32> -> vector<8x128xf32>
    %222 = arith.addf %221, %10 : vector<8x128xf32>
    %223 = vector.extract_strided_slice %220 {offsets = [0, 0], sizes = [8, 32], strides = [1, 1]} : vector<8x128xf32> to vector<8x32xf32>
    %224 = vector.extract_strided_slice %222 {offsets = [0, 0], sizes = [8, 32], strides = [1, 1]} : vector<8x128xf32> to vector<8x32xf32>
    %225 = arith.addf %223, %224 : vector<8x32xf32>
    %226 = arith.negf %225 : vector<8x32xf32>
    %227 = math.exp %226 : vector<8x32xf32>
    %cst_58 = arith.constant 1.000000e+00 : f32
    %228 = vector.broadcast %cst_58 : f32 to vector<8x32xf32>
    %229 = arith.addf %228, %227 : vector<8x32xf32>
    %230 = arith.divf %228, %229 : vector<8x32xf32>
    %231 = vector.extract_strided_slice %220 {offsets = [0, 32], sizes = [8, 32], strides = [1, 1]} : vector<8x128xf32> to vector<8x32xf32>
    %232 = vector.extract_strided_slice %222 {offsets = [0, 32], sizes = [8, 32], strides = [1, 1]} : vector<8x128xf32> to vector<8x32xf32>
    %233 = arith.addf %231, %232 : vector<8x32xf32>
    %234 = arith.negf %233 : vector<8x32xf32>
    %235 = math.exp %234 : vector<8x32xf32>
    %cst_59 = arith.constant 1.000000e+00 : f32
    %236 = vector.broadcast %cst_59 : f32 to vector<8x32xf32>
    %237 = arith.addf %236, %235 : vector<8x32xf32>
    %238 = arith.divf %236, %237 : vector<8x32xf32>
    %239 = vector.extract_strided_slice %220 {offsets = [0, 64], sizes = [8, 32], strides = [1, 1]} : vector<8x128xf32> to vector<8x32xf32>
    %240 = vector.extract_strided_slice %222 {offsets = [0, 64], sizes = [8, 32], strides = [1, 1]} : vector<8x128xf32> to vector<8x32xf32>
    %241 = arith.mulf %230, %240 : vector<8x32xf32>
    %242 = arith.addf %239, %241 : vector<8x32xf32>
    %243 = math.tanh %242 : vector<8x32xf32>
    %cst_60 = arith.constant 1.000000e+00 : f32
    %244 = vector.broadcast %cst_60 : f32 to vector<8x32xf32>
    %245 = arith.subf %244, %238 : vector<8x32xf32>
    %246 = arith.mulf %245, %243 : vector<8x32xf32>
    %247 = arith.mulf %238, %214 : vector<8x32xf32>
    %248 = arith.addf %246, %247 : vector<8x32xf32>
    %249 = arith.index_cast %218 : i32 to index
    %c0_61 = arith.constant 0 : index
    %250 = vector.load %arg16[%249, %c0_61] : memref<64x32xf32, #tpu.memory_space<vmem>>, vector<8x32xf32>
    tpu.vector_store %arg16[%249, %c0_61], %248 {strides = array<i32>} : memref<64x32xf32, #tpu.memory_space<vmem>>, vector<8x32xf32>,
    %c7_i32 = arith.constant 7 : i32
    %c8_i32_62 = arith.constant 8 : i32
    %251 = arith.muli %c7_i32, %c8_i32_62 : i32
    %252 = tpu.assume_multiple %251, 8 : i32
    %253 = arith.index_cast %252 : i32 to index
    %c0_63 = arith.constant 0 : index
    %254 = vector.load %arg15[%253, %c0_63] : memref<64x128xf32, #tpu.memory_space<vmem>>, vector<8x128xf32>
    %cst_64 = arith.constant dense<0.000000e+00> : vector<8x128xf32>
    %255 = tpu.matmul %248, %7, %cst_64 {dimension_numbers = #tpu.dot_dimension_numbers<[1], [0], [0], [1], [0, 0, 1, 1], [], []>} : vector<8x32xf32>, vector<32x128xf32>, vector<8x128xf32> -> vector<8x128xf32>
    %256 = arith.addf %255, %10 : vector<8x128xf32>
    %257 = vector.extract_strided_slice %254 {offsets = [0, 0], sizes = [8, 32], strides = [1, 1]} : vector<8x128xf32> to vector<8x32xf32>
    %258 = vector.extract_strided_slice %256 {offsets = [0, 0], sizes = [8, 32], strides = [1, 1]} : vector<8x128xf32> to vector<8x32xf32>
    %259 = arith.addf %257, %258 : vector<8x32xf32>
    %260 = arith.negf %259 : vector<8x32xf32>
    %261 = math.exp %260 : vector<8x32xf32>
    %cst_65 = arith.constant 1.000000e+00 : f32
    %262 = vector.broadcast %cst_65 : f32 to vector<8x32xf32>
    %263 = arith.addf %262, %261 : vector<8x32xf32>
    %264 = arith.divf %262, %263 : vector<8x32xf32>
    %265 = vector.extract_strided_slice %254 {offsets = [0, 32], sizes = [8, 32], strides = [1, 1]} : vector<8x128xf32> to vector<8x32xf32>
    %266 = vector.extract_strided_slice %256 {offsets = [0, 32], sizes = [8, 32], strides = [1, 1]} : vector<8x128xf32> to vector<8x32xf32>
    %267 = arith.addf %265, %266 : vector<8x32xf32>
    %268 = arith.negf %267 : vector<8x32xf32>
    %269 = math.exp %268 : vector<8x32xf32>
    %cst_66 = arith.constant 1.000000e+00 : f32
    %270 = vector.broadcast %cst_66 : f32 to vector<8x32xf32>
    %271 = arith.addf %270, %269 : vector<8x32xf32>
    %272 = arith.divf %270, %271 : vector<8x32xf32>
    %273 = vector.extract_strided_slice %254 {offsets = [0, 64], sizes = [8, 32], strides = [1, 1]} : vector<8x128xf32> to vector<8x32xf32>
    %274 = vector.extract_strided_slice %256 {offsets = [0, 64], sizes = [8, 32], strides = [1, 1]} : vector<8x128xf32> to vector<8x32xf32>
    %275 = arith.mulf %264, %274 : vector<8x32xf32>
    %276 = arith.addf %273, %275 : vector<8x32xf32>
    %277 = math.tanh %276 : vector<8x32xf32>
    %cst_67 = arith.constant 1.000000e+00 : f32
    %278 = vector.broadcast %cst_67 : f32 to vector<8x32xf32>
    %279 = arith.subf %278, %272 : vector<8x32xf32>
    %280 = arith.mulf %279, %277 : vector<8x32xf32>
    %281 = arith.mulf %272, %248 : vector<8x32xf32>
    %282 = arith.addf %280, %281 : vector<8x32xf32>
    %283 = arith.index_cast %252 : i32 to index
    %c0_68 = arith.constant 0 : index
    %284 = vector.load %arg16[%283, %c0_68] : memref<64x32xf32, #tpu.memory_space<vmem>>, vector<8x32xf32>
    tpu.vector_store %arg16[%283, %c0_68], %282 {strides = array<i32>} : memref<64x32xf32, #tpu.memory_space<vmem>>, vector<8x32xf32>,
    %c8_i32_69 = arith.constant 8 : i32
    %c0_70 = arith.constant 0 : index
    %c0_71 = arith.constant 0 : index
    %285 = vector.load %arg16[%c0_70, %c0_71] : memref<64x32xf32, #tpu.memory_space<vmem>>, vector<64x32xf32>
    %c0_72 = arith.constant 0 : index
    %c0_73 = arith.constant 0 : index
    %286 = vector.load %arg6[%c0_72, %c0_73] : memref<32x128xf32, #tpu.memory_space<vmem>>, vector<32x128xf32>
    %cst_74 = arith.constant dense<0.000000e+00> : vector<64x128xf32>
    %287 = tpu.matmul %285, %286, %cst_74 {dimension_numbers = #tpu.dot_dimension_numbers<[1], [0], [0], [1], [0, 0, 1, 1], [], []>} : vector<64x32xf32>, vector<32x128xf32>, vector<64x128xf32> -> vector<64x128xf32>
    %c0_75 = arith.constant 0 : index
    %c0_76 = arith.constant 0 : index
    %288 = vector.load %arg8[%c0_75, %c0_76] : memref<1x128xf32, #tpu.memory_space<vmem>>, vector<1x128xf32>
    %289 = vector.broadcast %288 : vector<1x128xf32> to vector<64x128xf32>
    %290 = arith.addf %287, %289 : vector<64x128xf32>
    %c0_77 = arith.constant 0 : index
    %c0_78 = arith.constant 0 : index
    %291 = vector.load %arg15[%c0_77, %c0_78] : memref<64x128xf32, #tpu.memory_space<vmem>>, vector<64x128xf32>
    tpu.vector_store %arg15[%c0_77, %c0_78], %290 {strides = array<i32>} : memref<64x128xf32, #tpu.memory_space<vmem>>, vector<64x128xf32>,
    %c0_79 = arith.constant 0 : index
    %c0_80 = arith.constant 0 : index
    %292 = vector.load %arg7[%c0_79, %c0_80] : memref<32x128xf32, #tpu.memory_space<vmem>>, vector<32x128xf32>
    %c0_81 = arith.constant 0 : index
    %c0_82 = arith.constant 0 : index
    %293 = vector.load %arg9[%c0_81, %c0_82] : memref<1x128xf32, #tpu.memory_space<vmem>>, vector<1x128xf32>
    %294 = vector.shape_cast %293 : vector<1x128xf32> to vector<1x128xf32>
    %295 = vector.broadcast %294 : vector<1x128xf32> to vector<8x128xf32>
    %c1 = arith.constant 1 : index
    %c0_83 = arith.constant 0 : index
    %c0_84 = arith.constant 0 : index
    %296 = vector.load %arg1[%c1, %c0_83, %c0_84] : memref<2x8x32xf32, #tpu.memory_space<vmem>>, vector<1x8x32xf32>
    %297 = vector.shape_cast %296 : vector<1x8x32xf32> to vector<8x32xf32>
    %c0_i32_85 = arith.constant 0 : i32
    %c8_i32_86 = arith.constant 8 : i32
    %298 = arith.muli %c0_i32_85, %c8_i32_86 : i32
    %299 = tpu.assume_multiple %298, 8 : i32
    %300 = arith.index_cast %299 : i32 to index
    %c0_87 = arith.constant 0 : index
    %301 = vector.load %arg15[%300, %c0_87] : memref<64x128xf32, #tpu.memory_space<vmem>>, vector<8x128xf32>
    %cst_88 = arith.constant dense<0.000000e+00> : vector<8x128xf32>
    %302 = tpu.matmul %297, %292, %cst_88 {dimension_numbers = #tpu.dot_dimension_numbers<[1], [0], [0], [1], [0, 0, 1, 1], [], []>} : vector<8x32xf32>, vector<32x128xf32>, vector<8x128xf32> -> vector<8x128xf32>
    %303 = arith.addf %302, %295 : vector<8x128xf32>
    %304 = vector.extract_strided_slice %301 {offsets = [0, 0], sizes = [8, 32], strides = [1, 1]} : vector<8x128xf32> to vector<8x32xf32>
    %305 = vector.extract_strided_slice %303 {offsets = [0, 0], sizes = [8, 32], strides = [1, 1]} : vector<8x128xf32> to vector<8x32xf32>
    %306 = arith.addf %304, %305 : vector<8x32xf32>
    %307 = arith.negf %306 : vector<8x32xf32>
    %308 = math.exp %307 : vector<8x32xf32>
    %cst_89 = arith.constant 1.000000e+00 : f32
    %309 = vector.broadcast %cst_89 : f32 to vector<8x32xf32>
    %310 = arith.addf %309, %308 : vector<8x32xf32>
    %311 = arith.divf %309, %310 : vector<8x32xf32>
    %312 = vector.extract_strided_slice %301 {offsets = [0, 32], sizes = [8, 32], strides = [1, 1]} : vector<8x128xf32> to vector<8x32xf32>
    %313 = vector.extract_strided_slice %303 {offsets = [0, 32], sizes = [8, 32], strides = [1, 1]} : vector<8x128xf32> to vector<8x32xf32>
    %314 = arith.addf %312, %313 : vector<8x32xf32>
    %315 = arith.negf %314 : vector<8x32xf32>
    %316 = math.exp %315 : vector<8x32xf32>
    %cst_90 = arith.constant 1.000000e+00 : f32
    %317 = vector.broadcast %cst_90 : f32 to vector<8x32xf32>
    %318 = arith.addf %317, %316 : vector<8x32xf32>
    %319 = arith.divf %317, %318 : vector<8x32xf32>
    %320 = vector.extract_strided_slice %301 {offsets = [0, 64], sizes = [8, 32], strides = [1, 1]} : vector<8x128xf32> to vector<8x32xf32>
    %321 = vector.extract_strided_slice %303 {offsets = [0, 64], sizes = [8, 32], strides = [1, 1]} : vector<8x128xf32> to vector<8x32xf32>
    %322 = arith.mulf %311, %321 : vector<8x32xf32>
    %323 = arith.addf %320, %322 : vector<8x32xf32>
    %324 = math.tanh %323 : vector<8x32xf32>
    %cst_91 = arith.constant 1.000000e+00 : f32
    %325 = vector.broadcast %cst_91 : f32 to vector<8x32xf32>
    %326 = arith.subf %325, %319 : vector<8x32xf32>
    %327 = arith.mulf %326, %324 : vector<8x32xf32>
    %328 = arith.mulf %319, %297 : vector<8x32xf32>
    %329 = arith.addf %327, %328 : vector<8x32xf32>
    %330 = arith.index_cast %299 : i32 to index
    %c0_92 = arith.constant 0 : index
    %331 = vector.load %arg16[%330, %c0_92] : memref<64x32xf32, #tpu.memory_space<vmem>>, vector<8x32xf32>
    tpu.vector_store %arg16[%330, %c0_92], %329 {strides = array<i32>} : memref<64x32xf32, #tpu.memory_space<vmem>>, vector<8x32xf32>,
    %c1_i32_93 = arith.constant 1 : i32
    %c8_i32_94 = arith.constant 8 : i32
    %332 = arith.muli %c1_i32_93, %c8_i32_94 : i32
    %333 = tpu.assume_multiple %332, 8 : i32
    %334 = arith.index_cast %333 : i32 to index
    %c0_95 = arith.constant 0 : index
    %335 = vector.load %arg15[%334, %c0_95] : memref<64x128xf32, #tpu.memory_space<vmem>>, vector<8x128xf32>
    %cst_96 = arith.constant dense<0.000000e+00> : vector<8x128xf32>
    %336 = tpu.matmul %329, %292, %cst_96 {dimension_numbers = #tpu.dot_dimension_numbers<[1], [0], [0], [1], [0, 0, 1, 1], [], []>} : vector<8x32xf32>, vector<32x128xf32>, vector<8x128xf32> -> vector<8x128xf32>
    %337 = arith.addf %336, %295 : vector<8x128xf32>
    %338 = vector.extract_strided_slice %335 {offsets = [0, 0], sizes = [8, 32], strides = [1, 1]} : vector<8x128xf32> to vector<8x32xf32>
    %339 = vector.extract_strided_slice %337 {offsets = [0, 0], sizes = [8, 32], strides = [1, 1]} : vector<8x128xf32> to vector<8x32xf32>
    %340 = arith.addf %338, %339 : vector<8x32xf32>
    %341 = arith.negf %340 : vector<8x32xf32>
    %342 = math.exp %341 : vector<8x32xf32>
    %cst_97 = arith.constant 1.000000e+00 : f32
    %343 = vector.broadcast %cst_97 : f32 to vector<8x32xf32>
    %344 = arith.addf %343, %342 : vector<8x32xf32>
    %345 = arith.divf %343, %344 : vector<8x32xf32>
    %346 = vector.extract_strided_slice %335 {offsets = [0, 32], sizes = [8, 32], strides = [1, 1]} : vector<8x128xf32> to vector<8x32xf32>
    %347 = vector.extract_strided_slice %337 {offsets = [0, 32], sizes = [8, 32], strides = [1, 1]} : vector<8x128xf32> to vector<8x32xf32>
    %348 = arith.addf %346, %347 : vector<8x32xf32>
    %349 = arith.negf %348 : vector<8x32xf32>
    %350 = math.exp %349 : vector<8x32xf32>
    %cst_98 = arith.constant 1.000000e+00 : f32
    %351 = vector.broadcast %cst_98 : f32 to vector<8x32xf32>
    %352 = arith.addf %351, %350 : vector<8x32xf32>
    %353 = arith.divf %351, %352 : vector<8x32xf32>
    %354 = vector.extract_strided_slice %335 {offsets = [0, 64], sizes = [8, 32], strides = [1, 1]} : vector<8x128xf32> to vector<8x32xf32>
    %355 = vector.extract_strided_slice %337 {offsets = [0, 64], sizes = [8, 32], strides = [1, 1]} : vector<8x128xf32> to vector<8x32xf32>
    %356 = arith.mulf %345, %355 : vector<8x32xf32>
    %357 = arith.addf %354, %356 : vector<8x32xf32>
    %358 = math.tanh %357 : vector<8x32xf32>
    %cst_99 = arith.constant 1.000000e+00 : f32
    %359 = vector.broadcast %cst_99 : f32 to vector<8x32xf32>
    %360 = arith.subf %359, %353 : vector<8x32xf32>
    %361 = arith.mulf %360, %358 : vector<8x32xf32>
    %362 = arith.mulf %353, %329 : vector<8x32xf32>
    %363 = arith.addf %361, %362 : vector<8x32xf32>
    %364 = arith.index_cast %333 : i32 to index
    %c0_100 = arith.constant 0 : index
    %365 = vector.load %arg16[%364, %c0_100] : memref<64x32xf32, #tpu.memory_space<vmem>>, vector<8x32xf32>
    tpu.vector_store %arg16[%364, %c0_100], %363 {strides = array<i32>} : memref<64x32xf32, #tpu.memory_space<vmem>>, vector<8x32xf32>,
    %c2_i32_101 = arith.constant 2 : i32
    %c8_i32_102 = arith.constant 8 : i32
    %366 = arith.muli %c2_i32_101, %c8_i32_102 : i32
    %367 = tpu.assume_multiple %366, 8 : i32
    %368 = arith.index_cast %367 : i32 to index
    %c0_103 = arith.constant 0 : index
    %369 = vector.load %arg15[%368, %c0_103] : memref<64x128xf32, #tpu.memory_space<vmem>>, vector<8x128xf32>
    %cst_104 = arith.constant dense<0.000000e+00> : vector<8x128xf32>
    %370 = tpu.matmul %363, %292, %cst_104 {dimension_numbers = #tpu.dot_dimension_numbers<[1], [0], [0], [1], [0, 0, 1, 1], [], []>} : vector<8x32xf32>, vector<32x128xf32>, vector<8x128xf32> -> vector<8x128xf32>
    %371 = arith.addf %370, %295 : vector<8x128xf32>
    %372 = vector.extract_strided_slice %369 {offsets = [0, 0], sizes = [8, 32], strides = [1, 1]} : vector<8x128xf32> to vector<8x32xf32>
    %373 = vector.extract_strided_slice %371 {offsets = [0, 0], sizes = [8, 32], strides = [1, 1]} : vector<8x128xf32> to vector<8x32xf32>
    %374 = arith.addf %372, %373 : vector<8x32xf32>
    %375 = arith.negf %374 : vector<8x32xf32>
    %376 = math.exp %375 : vector<8x32xf32>
    %cst_105 = arith.constant 1.000000e+00 : f32
    %377 = vector.broadcast %cst_105 : f32 to vector<8x32xf32>
    %378 = arith.addf %377, %376 : vector<8x32xf32>
    %379 = arith.divf %377, %378 : vector<8x32xf32>
    %380 = vector.extract_strided_slice %369 {offsets = [0, 32], sizes = [8, 32], strides = [1, 1]} : vector<8x128xf32> to vector<8x32xf32>
    %381 = vector.extract_strided_slice %371 {offsets = [0, 32], sizes = [8, 32], strides = [1, 1]} : vector<8x128xf32> to vector<8x32xf32>
    %382 = arith.addf %380, %381 : vector<8x32xf32>
    %383 = arith.negf %382 : vector<8x32xf32>
    %384 = math.exp %383 : vector<8x32xf32>
    %cst_106 = arith.constant 1.000000e+00 : f32
    %385 = vector.broadcast %cst_106 : f32 to vector<8x32xf32>
    %386 = arith.addf %385, %384 : vector<8x32xf32>
    %387 = arith.divf %385, %386 : vector<8x32xf32>
    %388 = vector.extract_strided_slice %369 {offsets = [0, 64], sizes = [8, 32], strides = [1, 1]} : vector<8x128xf32> to vector<8x32xf32>
    %389 = vector.extract_strided_slice %371 {offsets = [0, 64], sizes = [8, 32], strides = [1, 1]} : vector<8x128xf32> to vector<8x32xf32>
    %390 = arith.mulf %379, %389 : vector<8x32xf32>
    %391 = arith.addf %388, %390 : vector<8x32xf32>
    %392 = math.tanh %391 : vector<8x32xf32>
    %cst_107 = arith.constant 1.000000e+00 : f32
    %393 = vector.broadcast %cst_107 : f32 to vector<8x32xf32>
    %394 = arith.subf %393, %387 : vector<8x32xf32>
    %395 = arith.mulf %394, %392 : vector<8x32xf32>
    %396 = arith.mulf %387, %363 : vector<8x32xf32>
    %397 = arith.addf %395, %396 : vector<8x32xf32>
    %398 = arith.index_cast %367 : i32 to index
    %c0_108 = arith.constant 0 : index
    %399 = vector.load %arg16[%398, %c0_108] : memref<64x32xf32, #tpu.memory_space<vmem>>, vector<8x32xf32>
    tpu.vector_store %arg16[%398, %c0_108], %397 {strides = array<i32>} : memref<64x32xf32, #tpu.memory_space<vmem>>, vector<8x32xf32>,
    %c3_i32_109 = arith.constant 3 : i32
    %c8_i32_110 = arith.constant 8 : i32
    %400 = arith.muli %c3_i32_109, %c8_i32_110 : i32
    %401 = tpu.assume_multiple %400, 8 : i32
    %402 = arith.index_cast %401 : i32 to index
    %c0_111 = arith.constant 0 : index
    %403 = vector.load %arg15[%402, %c0_111] : memref<64x128xf32, #tpu.memory_space<vmem>>, vector<8x128xf32>
    %cst_112 = arith.constant dense<0.000000e+00> : vector<8x128xf32>
    %404 = tpu.matmul %397, %292, %cst_112 {dimension_numbers = #tpu.dot_dimension_numbers<[1], [0], [0], [1], [0, 0, 1, 1], [], []>} : vector<8x32xf32>, vector<32x128xf32>, vector<8x128xf32> -> vector<8x128xf32>
    %405 = arith.addf %404, %295 : vector<8x128xf32>
    %406 = vector.extract_strided_slice %403 {offsets = [0, 0], sizes = [8, 32], strides = [1, 1]} : vector<8x128xf32> to vector<8x32xf32>
    %407 = vector.extract_strided_slice %405 {offsets = [0, 0], sizes = [8, 32], strides = [1, 1]} : vector<8x128xf32> to vector<8x32xf32>
    %408 = arith.addf %406, %407 : vector<8x32xf32>
    %409 = arith.negf %408 : vector<8x32xf32>
    %410 = math.exp %409 : vector<8x32xf32>
    %cst_113 = arith.constant 1.000000e+00 : f32
    %411 = vector.broadcast %cst_113 : f32 to vector<8x32xf32>
    %412 = arith.addf %411, %410 : vector<8x32xf32>
    %413 = arith.divf %411, %412 : vector<8x32xf32>
    %414 = vector.extract_strided_slice %403 {offsets = [0, 32], sizes = [8, 32], strides = [1, 1]} : vector<8x128xf32> to vector<8x32xf32>
    %415 = vector.extract_strided_slice %405 {offsets = [0, 32], sizes = [8, 32], strides = [1, 1]} : vector<8x128xf32> to vector<8x32xf32>
    %416 = arith.addf %414, %415 : vector<8x32xf32>
    %417 = arith.negf %416 : vector<8x32xf32>
    %418 = math.exp %417 : vector<8x32xf32>
    %cst_114 = arith.constant 1.000000e+00 : f32
    %419 = vector.broadcast %cst_114 : f32 to vector<8x32xf32>
    %420 = arith.addf %419, %418 : vector<8x32xf32>
    %421 = arith.divf %419, %420 : vector<8x32xf32>
    %422 = vector.extract_strided_slice %403 {offsets = [0, 64], sizes = [8, 32], strides = [1, 1]} : vector<8x128xf32> to vector<8x32xf32>
    %423 = vector.extract_strided_slice %405 {offsets = [0, 64], sizes = [8, 32], strides = [1, 1]} : vector<8x128xf32> to vector<8x32xf32>
    %424 = arith.mulf %413, %423 : vector<8x32xf32>
    %425 = arith.addf %422, %424 : vector<8x32xf32>
    %426 = math.tanh %425 : vector<8x32xf32>
    %cst_115 = arith.constant 1.000000e+00 : f32
    %427 = vector.broadcast %cst_115 : f32 to vector<8x32xf32>
    %428 = arith.subf %427, %421 : vector<8x32xf32>
    %429 = arith.mulf %428, %426 : vector<8x32xf32>
    %430 = arith.mulf %421, %397 : vector<8x32xf32>
    %431 = arith.addf %429, %430 : vector<8x32xf32>
    %432 = arith.index_cast %401 : i32 to index
    %c0_116 = arith.constant 0 : index
    %433 = vector.load %arg16[%432, %c0_116] : memref<64x32xf32, #tpu.memory_space<vmem>>, vector<8x32xf32>
    tpu.vector_store %arg16[%432, %c0_116], %431 {strides = array<i32>} : memref<64x32xf32, #tpu.memory_space<vmem>>, vector<8x32xf32>,
    %c4_i32_117 = arith.constant 4 : i32
    %c8_i32_118 = arith.constant 8 : i32
    %434 = arith.muli %c4_i32_117, %c8_i32_118 : i32
    %435 = tpu.assume_multiple %434, 8 : i32
    %436 = arith.index_cast %435 : i32 to index
    %c0_119 = arith.constant 0 : index
    %437 = vector.load %arg15[%436, %c0_119] : memref<64x128xf32, #tpu.memory_space<vmem>>, vector<8x128xf32>
    %cst_120 = arith.constant dense<0.000000e+00> : vector<8x128xf32>
    %438 = tpu.matmul %431, %292, %cst_120 {dimension_numbers = #tpu.dot_dimension_numbers<[1], [0], [0], [1], [0, 0, 1, 1], [], []>} : vector<8x32xf32>, vector<32x128xf32>, vector<8x128xf32> -> vector<8x128xf32>
    %439 = arith.addf %438, %295 : vector<8x128xf32>
    %440 = vector.extract_strided_slice %437 {offsets = [0, 0], sizes = [8, 32], strides = [1, 1]} : vector<8x128xf32> to vector<8x32xf32>
    %441 = vector.extract_strided_slice %439 {offsets = [0, 0], sizes = [8, 32], strides = [1, 1]} : vector<8x128xf32> to vector<8x32xf32>
    %442 = arith.addf %440, %441 : vector<8x32xf32>
    %443 = arith.negf %442 : vector<8x32xf32>
    %444 = math.exp %443 : vector<8x32xf32>
    %cst_121 = arith.constant 1.000000e+00 : f32
    %445 = vector.broadcast %cst_121 : f32 to vector<8x32xf32>
    %446 = arith.addf %445, %444 : vector<8x32xf32>
    %447 = arith.divf %445, %446 : vector<8x32xf32>
    %448 = vector.extract_strided_slice %437 {offsets = [0, 32], sizes = [8, 32], strides = [1, 1]} : vector<8x128xf32> to vector<8x32xf32>
    %449 = vector.extract_strided_slice %439 {offsets = [0, 32], sizes = [8, 32], strides = [1, 1]} : vector<8x128xf32> to vector<8x32xf32>
    %450 = arith.addf %448, %449 : vector<8x32xf32>
    %451 = arith.negf %450 : vector<8x32xf32>
    %452 = math.exp %451 : vector<8x32xf32>
    %cst_122 = arith.constant 1.000000e+00 : f32
    %453 = vector.broadcast %cst_122 : f32 to vector<8x32xf32>
    %454 = arith.addf %453, %452 : vector<8x32xf32>
    %455 = arith.divf %453, %454 : vector<8x32xf32>
    %456 = vector.extract_strided_slice %437 {offsets = [0, 64], sizes = [8, 32], strides = [1, 1]} : vector<8x128xf32> to vector<8x32xf32>
    %457 = vector.extract_strided_slice %439 {offsets = [0, 64], sizes = [8, 32], strides = [1, 1]} : vector<8x128xf32> to vector<8x32xf32>
    %458 = arith.mulf %447, %457 : vector<8x32xf32>
    %459 = arith.addf %456, %458 : vector<8x32xf32>
    %460 = math.tanh %459 : vector<8x32xf32>
    %cst_123 = arith.constant 1.000000e+00 : f32
    %461 = vector.broadcast %cst_123 : f32 to vector<8x32xf32>
    %462 = arith.subf %461, %455 : vector<8x32xf32>
    %463 = arith.mulf %462, %460 : vector<8x32xf32>
    %464 = arith.mulf %455, %431 : vector<8x32xf32>
    %465 = arith.addf %463, %464 : vector<8x32xf32>
    %466 = arith.index_cast %435 : i32 to index
    %c0_124 = arith.constant 0 : index
    %467 = vector.load %arg16[%466, %c0_124] : memref<64x32xf32, #tpu.memory_space<vmem>>, vector<8x32xf32>
    tpu.vector_store %arg16[%466, %c0_124], %465 {strides = array<i32>} : memref<64x32xf32, #tpu.memory_space<vmem>>, vector<8x32xf32>,
    %c5_i32_125 = arith.constant 5 : i32
    %c8_i32_126 = arith.constant 8 : i32
    %468 = arith.muli %c5_i32_125, %c8_i32_126 : i32
    %469 = tpu.assume_multiple %468, 8 : i32
    %470 = arith.index_cast %469 : i32 to index
    %c0_127 = arith.constant 0 : index
    %471 = vector.load %arg15[%470, %c0_127] : memref<64x128xf32, #tpu.memory_space<vmem>>, vector<8x128xf32>
    %cst_128 = arith.constant dense<0.000000e+00> : vector<8x128xf32>
    %472 = tpu.matmul %465, %292, %cst_128 {dimension_numbers = #tpu.dot_dimension_numbers<[1], [0], [0], [1], [0, 0, 1, 1], [], []>} : vector<8x32xf32>, vector<32x128xf32>, vector<8x128xf32> -> vector<8x128xf32>
    %473 = arith.addf %472, %295 : vector<8x128xf32>
    %474 = vector.extract_strided_slice %471 {offsets = [0, 0], sizes = [8, 32], strides = [1, 1]} : vector<8x128xf32> to vector<8x32xf32>
    %475 = vector.extract_strided_slice %473 {offsets = [0, 0], sizes = [8, 32], strides = [1, 1]} : vector<8x128xf32> to vector<8x32xf32>
    %476 = arith.addf %474, %475 : vector<8x32xf32>
    %477 = arith.negf %476 : vector<8x32xf32>
    %478 = math.exp %477 : vector<8x32xf32>
    %cst_129 = arith.constant 1.000000e+00 : f32
    %479 = vector.broadcast %cst_129 : f32 to vector<8x32xf32>
    %480 = arith.addf %479, %478 : vector<8x32xf32>
    %481 = arith.divf %479, %480 : vector<8x32xf32>
    %482 = vector.extract_strided_slice %471 {offsets = [0, 32], sizes = [8, 32], strides = [1, 1]} : vector<8x128xf32> to vector<8x32xf32>
    %483 = vector.extract_strided_slice %473 {offsets = [0, 32], sizes = [8, 32], strides = [1, 1]} : vector<8x128xf32> to vector<8x32xf32>
    %484 = arith.addf %482, %483 : vector<8x32xf32>
    %485 = arith.negf %484 : vector<8x32xf32>
    %486 = math.exp %485 : vector<8x32xf32>
    %cst_130 = arith.constant 1.000000e+00 : f32
    %487 = vector.broadcast %cst_130 : f32 to vector<8x32xf32>
    %488 = arith.addf %487, %486 : vector<8x32xf32>
    %489 = arith.divf %487, %488 : vector<8x32xf32>
    %490 = vector.extract_strided_slice %471 {offsets = [0, 64], sizes = [8, 32], strides = [1, 1]} : vector<8x128xf32> to vector<8x32xf32>
    %491 = vector.extract_strided_slice %473 {offsets = [0, 64], sizes = [8, 32], strides = [1, 1]} : vector<8x128xf32> to vector<8x32xf32>
    %492 = arith.mulf %481, %491 : vector<8x32xf32>
    %493 = arith.addf %490, %492 : vector<8x32xf32>
    %494 = math.tanh %493 : vector<8x32xf32>
    %cst_131 = arith.constant 1.000000e+00 : f32
    %495 = vector.broadcast %cst_131 : f32 to vector<8x32xf32>
    %496 = arith.subf %495, %489 : vector<8x32xf32>
    %497 = arith.mulf %496, %494 : vector<8x32xf32>
    %498 = arith.mulf %489, %465 : vector<8x32xf32>
    %499 = arith.addf %497, %498 : vector<8x32xf32>
    %500 = arith.index_cast %469 : i32 to index
    %c0_132 = arith.constant 0 : index
    %501 = vector.load %arg16[%500, %c0_132] : memref<64x32xf32, #tpu.memory_space<vmem>>, vector<8x32xf32>
    tpu.vector_store %arg16[%500, %c0_132], %499 {strides = array<i32>} : memref<64x32xf32, #tpu.memory_space<vmem>>, vector<8x32xf32>,
    %c6_i32_133 = arith.constant 6 : i32
    %c8_i32_134 = arith.constant 8 : i32
    %502 = arith.muli %c6_i32_133, %c8_i32_134 : i32
    %503 = tpu.assume_multiple %502, 8 : i32
    %504 = arith.index_cast %503 : i32 to index
    %c0_135 = arith.constant 0 : index
    %505 = vector.load %arg15[%504, %c0_135] : memref<64x128xf32, #tpu.memory_space<vmem>>, vector<8x128xf32>
    %cst_136 = arith.constant dense<0.000000e+00> : vector<8x128xf32>
    %506 = tpu.matmul %499, %292, %cst_136 {dimension_numbers = #tpu.dot_dimension_numbers<[1], [0], [0], [1], [0, 0, 1, 1], [], []>} : vector<8x32xf32>, vector<32x128xf32>, vector<8x128xf32> -> vector<8x128xf32>
    %507 = arith.addf %506, %295 : vector<8x128xf32>
    %508 = vector.extract_strided_slice %505 {offsets = [0, 0], sizes = [8, 32], strides = [1, 1]} : vector<8x128xf32> to vector<8x32xf32>
    %509 = vector.extract_strided_slice %507 {offsets = [0, 0], sizes = [8, 32], strides = [1, 1]} : vector<8x128xf32> to vector<8x32xf32>
    %510 = arith.addf %508, %509 : vector<8x32xf32>
    %511 = arith.negf %510 : vector<8x32xf32>
    %512 = math.exp %511 : vector<8x32xf32>
    %cst_137 = arith.constant 1.000000e+00 : f32
    %513 = vector.broadcast %cst_137 : f32 to vector<8x32xf32>
    %514 = arith.addf %513, %512 : vector<8x32xf32>
    %515 = arith.divf %513, %514 : vector<8x32xf32>
    %516 = vector.extract_strided_slice %505 {offsets = [0, 32], sizes = [8, 32], strides = [1, 1]} : vector<8x128xf32> to vector<8x32xf32>
    %517 = vector.extract_strided_slice %507 {offsets = [0, 32], sizes = [8, 32], strides = [1, 1]} : vector<8x128xf32> to vector<8x32xf32>
    %518 = arith.addf %516, %517 : vector<8x32xf32>
    %519 = arith.negf %518 : vector<8x32xf32>
    %520 = math.exp %519 : vector<8x32xf32>
    %cst_138 = arith.constant 1.000000e+00 : f32
    %521 = vector.broadcast %cst_138 : f32 to vector<8x32xf32>
    %522 = arith.addf %521, %520 : vector<8x32xf32>
    %523 = arith.divf %521, %522 : vector<8x32xf32>
    %524 = vector.extract_strided_slice %505 {offsets = [0, 64], sizes = [8, 32], strides = [1, 1]} : vector<8x128xf32> to vector<8x32xf32>
    %525 = vector.extract_strided_slice %507 {offsets = [0, 64], sizes = [8, 32], strides = [1, 1]} : vector<8x128xf32> to vector<8x32xf32>
    %526 = arith.mulf %515, %525 : vector<8x32xf32>
    %527 = arith.addf %524, %526 : vector<8x32xf32>
    %528 = math.tanh %527 : vector<8x32xf32>
    %cst_139 = arith.constant 1.000000e+00 : f32
    %529 = vector.broadcast %cst_139 : f32 to vector<8x32xf32>
    %530 = arith.subf %529, %523 : vector<8x32xf32>
    %531 = arith.mulf %530, %528 : vector<8x32xf32>
    %532 = arith.mulf %523, %499 : vector<8x32xf32>
    %533 = arith.addf %531, %532 : vector<8x32xf32>
    %534 = arith.index_cast %503 : i32 to index
    %c0_140 = arith.constant 0 : index
    %535 = vector.load %arg16[%534, %c0_140] : memref<64x32xf32, #tpu.memory_space<vmem>>, vector<8x32xf32>
    tpu.vector_store %arg16[%534, %c0_140], %533 {strides = array<i32>} : memref<64x32xf32, #tpu.memory_space<vmem>>, vector<8x32xf32>,
    %c7_i32_141 = arith.constant 7 : i32
    %c8_i32_142 = arith.constant 8 : i32
    %536 = arith.muli %c7_i32_141, %c8_i32_142 : i32
    %537 = tpu.assume_multiple %536, 8 : i32
    %538 = arith.index_cast %537 : i32 to index
    %c0_143 = arith.constant 0 : index
    %539 = vector.load %arg15[%538, %c0_143] : memref<64x128xf32, #tpu.memory_space<vmem>>, vector<8x128xf32>
    %cst_144 = arith.constant dense<0.000000e+00> : vector<8x128xf32>
    %540 = tpu.matmul %533, %292, %cst_144 {dimension_numbers = #tpu.dot_dimension_numbers<[1], [0], [0], [1], [0, 0, 1, 1], [], []>} : vector<8x32xf32>, vector<32x128xf32>, vector<8x128xf32> -> vector<8x128xf32>
    %541 = arith.addf %540, %295 : vector<8x128xf32>
    %542 = vector.extract_strided_slice %539 {offsets = [0, 0], sizes = [8, 32], strides = [1, 1]} : vector<8x128xf32> to vector<8x32xf32>
    %543 = vector.extract_strided_slice %541 {offsets = [0, 0], sizes = [8, 32], strides = [1, 1]} : vector<8x128xf32> to vector<8x32xf32>
    %544 = arith.addf %542, %543 : vector<8x32xf32>
    %545 = arith.negf %544 : vector<8x32xf32>
    %546 = math.exp %545 : vector<8x32xf32>
    %cst_145 = arith.constant 1.000000e+00 : f32
    %547 = vector.broadcast %cst_145 : f32 to vector<8x32xf32>
    %548 = arith.addf %547, %546 : vector<8x32xf32>
    %549 = arith.divf %547, %548 : vector<8x32xf32>
    %550 = vector.extract_strided_slice %539 {offsets = [0, 32], sizes = [8, 32], strides = [1, 1]} : vector<8x128xf32> to vector<8x32xf32>
    %551 = vector.extract_strided_slice %541 {offsets = [0, 32], sizes = [8, 32], strides = [1, 1]} : vector<8x128xf32> to vector<8x32xf32>
    %552 = arith.addf %550, %551 : vector<8x32xf32>
    %553 = arith.negf %552 : vector<8x32xf32>
    %554 = math.exp %553 : vector<8x32xf32>
    %cst_146 = arith.constant 1.000000e+00 : f32
    %555 = vector.broadcast %cst_146 : f32 to vector<8x32xf32>
    %556 = arith.addf %555, %554 : vector<8x32xf32>
    %557 = arith.divf %555, %556 : vector<8x32xf32>
    %558 = vector.extract_strided_slice %539 {offsets = [0, 64], sizes = [8, 32], strides = [1, 1]} : vector<8x128xf32> to vector<8x32xf32>
    %559 = vector.extract_strided_slice %541 {offsets = [0, 64], sizes = [8, 32], strides = [1, 1]} : vector<8x128xf32> to vector<8x32xf32>
    %560 = arith.mulf %549, %559 : vector<8x32xf32>
    %561 = arith.addf %558, %560 : vector<8x32xf32>
    %562 = math.tanh %561 : vector<8x32xf32>
    %cst_147 = arith.constant 1.000000e+00 : f32
    %563 = vector.broadcast %cst_147 : f32 to vector<8x32xf32>
    %564 = arith.subf %563, %557 : vector<8x32xf32>
    %565 = arith.mulf %564, %562 : vector<8x32xf32>
    %566 = arith.mulf %557, %533 : vector<8x32xf32>
    %567 = arith.addf %565, %566 : vector<8x32xf32>
    %568 = arith.index_cast %537 : i32 to index
    %c0_148 = arith.constant 0 : index
    %569 = vector.load %arg16[%568, %c0_148] : memref<64x32xf32, #tpu.memory_space<vmem>>, vector<8x32xf32>
    tpu.vector_store %arg16[%568, %c0_148], %567 {strides = array<i32>} : memref<64x32xf32, #tpu.memory_space<vmem>>, vector<8x32xf32>,
    %c8_i32_149 = arith.constant 8 : i32
    %c0_150 = arith.constant 0 : index
    %c0_151 = arith.constant 0 : index
    %570 = vector.load %arg16[%c0_150, %c0_151] : memref<64x32xf32, #tpu.memory_space<vmem>>, vector<64x32xf32>
    %c0_152 = arith.constant 0 : index
    %c0_153 = arith.constant 0 : index
    %571 = vector.load %arg10[%c0_152, %c0_153] : memref<32x32xf32, #tpu.memory_space<vmem>>, vector<32x32xf32>
    %cst_154 = arith.constant dense<0.000000e+00> : vector<64x32xf32>
    %572 = tpu.matmul %570, %571, %cst_154 {dimension_numbers = #tpu.dot_dimension_numbers<[1], [0], [0], [1], [0, 0, 1, 1], [], []>} : vector<64x32xf32>, vector<32x32xf32>, vector<64x32xf32> -> vector<64x32xf32>
    %c0_155 = arith.constant 0 : index
    %c0_156 = arith.constant 0 : index
    %573 = vector.load %arg11[%c0_155, %c0_156] : memref<1x32xf32, #tpu.memory_space<vmem>>, vector<1x32xf32>
    %574 = vector.broadcast %573 : vector<1x32xf32> to vector<64x32xf32>
    %575 = arith.addf %572, %574 : vector<64x32xf32>
    %cst_157 = arith.constant 0.000000e+00 : f32
    %576 = vector.broadcast %cst_157 : f32 to vector<64x32xf32>
    %577 = arith.maximumf %575, %576 : vector<64x32xf32>
    %c0_158 = arith.constant 0 : index
    %c0_159 = arith.constant 0 : index
    %578 = vector.load %arg12[%c0_158, %c0_159] : memref<32x128xf32, #tpu.memory_space<vmem>>, vector<32x128xf32>
    %cst_160 = arith.constant dense<0.000000e+00> : vector<64x128xf32>
    %579 = tpu.matmul %577, %578, %cst_160 {dimension_numbers = #tpu.dot_dimension_numbers<[1], [0], [0], [1], [0, 0, 1, 1], [], []>} : vector<64x32xf32>, vector<32x128xf32>, vector<64x128xf32> -> vector<64x128xf32>
    %c0_161 = arith.constant 0 : index
    %c0_162 = arith.constant 0 : index
    %580 = vector.load %arg13[%c0_161, %c0_162] : memref<1x128xf32, #tpu.memory_space<vmem>>, vector<1x128xf32>
    %581 = vector.broadcast %580 : vector<1x128xf32> to vector<64x128xf32>
    %582 = arith.addf %579, %581 : vector<64x128xf32>
    %c0_163 = arith.constant 0 : index
    %c0_164 = arith.constant 0 : index
    %583 = vector.load %arg14[%c0_163, %c0_164] : memref<64x128xf32, #tpu.memory_space<vmem>>, vector<64x128xf32>
    tpu.vector_store %arg14[%c0_163, %c0_164], %582 {strides = array<i32>} : memref<64x128xf32, #tpu.memory_space<vmem>>, vector<64x128xf32>,
    return
  }
}

</mosaic_0001>

<llo_original>
// kernel: gru_model_forward.1
$region0: #{gru_model_forward.1}
  #allocation0 [shape = 'u32[]', space=smem, size = 0x4, offset = 0x4, fixed_abs, tag = 'smem constant byte address 0x4 - core index']
  #allocation1 [shape = 'u32[72,128]{1,0:T(1,128)}', space=vmem, size = 0x9000, scoped, tag = 'internal scratch']
  #allocation2 [shape = 'f32[64,128]{1,0:T(8,128)}', space=vmem, size = 0x8000, scoped, tag = 'scratch operand']
  #allocation3 [shape = 'f32[64,32]{1,0:T(8,128)}', space=vmem, size = 0x8000, scoped, tag = 'scratch operand']
  %s0 = inlined_call_operand.vmem [shape: f32[64,128], index: 0, kind: input, shape index: {}]
  %s1 = inlined_call_operand.vmem [shape: f32[2,8,32], index: 1, kind: input, shape index: {}]
  %s2 = inlined_call_operand.vmem [shape: f32[128,128], index: 2, kind: input, shape index: {}]
  %s3 = inlined_call_operand.vmem [shape: f32[32,128], index: 3, kind: input, shape index: {}]
  %s4 = inlined_call_operand.vmem [shape: f32[1,128], index: 4, kind: input, shape index: {}]
  %s5 = inlined_call_operand.vmem [shape: f32[1,128], index: 5, kind: input, shape index: {}]
  %s6 = inlined_call_operand.vmem [shape: f32[32,128], index: 6, kind: input, shape index: {}]
  %s7 = inlined_call_operand.vmem [shape: f32[32,128], index: 7, kind: input, shape index: {}]
  %s8 = inlined_call_operand.vmem [shape: f32[1,128], index: 8, kind: input, shape index: {}]
  %s9 = inlined_call_operand.vmem [shape: f32[1,128], index: 9, kind: input, shape index: {}]
  %s10 = inlined_call_operand.vmem [shape: f32[32,32], index: 10, kind: input, shape index: {}]
  %s11 = inlined_call_operand.vmem [shape: f32[1,32], index: 11, kind: input, shape index: {}]
  %s12 = inlined_call_operand.vmem [shape: f32[32,128], index: 12, kind: input, shape index: {}]
  %s13 = inlined_call_operand.vmem [shape: f32[1,128], index: 13, kind: input, shape index: {}]
  %s14 = inlined_call_operand.vmem [shape: f32[64,128], index: 14, kind: output, shape index: {}]
  %s15 = sld [smem:[#allocation0]]
  $region66: #{gru_model_forward.1} parent=0
    _
  %s17 = ssub.s32 1, %s15
  %s18 = scalar_select 0, %s17, %s15
  // Predicated region
  $region2: #{gru_model_forward.1} parent=0 // pred_check
    _
  $region3: #{gru_model_forward.1} parent=0 // pred_check_branch
    %20 = sbr.rel (0) target = $region5
  $region4: #{gru_model_forward.1} parent=0 // pred_region
    _
  $region5: #{gru_model_forward.1} parent=0 // pred_fallthru
    _
  // Predicated region
  $region6: #{gru_model_forward.1} parent=0 // pred_check
    _
  $region7: #{gru_model_forward.1} parent=0 // pred_check_branch
    %22 = sbr.rel (0) target = $region9
  $region8: #{gru_model_forward.1} parent=0 // pred_region
    _
  $region9: #{gru_model_forward.1} parent=0 // pred_fallthru
    _
  // Predicated region
  $region10: #{gru_model_forward.1} parent=0 // pred_check
    _
  $region11: #{gru_model_forward.1} parent=0 // pred_check_branch
    %24 = sbr.rel (0) target = $region13
  $region12: #{gru_model_forward.1} parent=0 // pred_region
    _
  $region13: #{gru_model_forward.1} parent=0 // pred_fallthru
    _
  // Predicated region
  $region14: #{gru_model_forward.1} parent=0 // pred_check
    _
  $region15: #{gru_model_forward.1} parent=0 // pred_check_branch
    %26 = sbr.rel (0) target = $region17
  $region16: #{gru_model_forward.1} parent=0 // pred_region
    _
  $region17: #{gru_model_forward.1} parent=0 // pred_fallthru
    _
  // Predicated region
  $region18: #{gru_model_forward.1} parent=0 // pred_check
    _
  $region19: #{gru_model_forward.1} parent=0 // pred_check_branch
    %28 = sbr.rel (0) target = $region21
  $region20: #{gru_model_forward.1} parent=0 // pred_region
    _
  $region21: #{gru_model_forward.1} parent=0 // pred_fallthru
    _
  // Predicated region
  $region22: #{gru_model_forward.1} parent=0 // pred_check
    _
  $region23: #{gru_model_forward.1} parent=0 // pred_check_branch
    %30 = sbr.rel (0) target = $region25
  $region24: #{gru_model_forward.1} parent=0 // pred_region
    _
  $region25: #{gru_model_forward.1} parent=0 // pred_fallthru
    _
  // Predicated region
  $region26: #{gru_model_forward.1} parent=0 // pred_check
    _
  $region27: #{gru_model_forward.1} parent=0 // pred_check_branch
    %32 = sbr.rel (0) target = $region29
  $region28: #{gru_model_forward.1} parent=0 // pred_region
    _
  $region29: #{gru_model_forward.1} parent=0 // pred_fallthru
    _
  // Predicated region
  $region30: #{gru_model_forward.1} parent=0 // pred_check
    _
  $region31: #{gru_model_forward.1} parent=0 // pred_check_branch
    %34 = sbr.rel (0) target = $region33
  $region32: #{gru_model_forward.1} parent=0 // pred_region
    _
  $region33: #{gru_model_forward.1} parent=0 // pred_fallthru
    _
  // Predicated region
  $region34: #{gru_model_forward.1} parent=0 // pred_check
    _
  $region35: #{gru_model_forward.1} parent=0 // pred_check_branch
    %36 = sbr.rel (0) target = $region37
  $region36: #{gru_model_forward.1} parent=0 // pred_region
    _
  $region37: #{gru_model_forward.1} parent=0 // pred_fallthru
    _
  // Predicated region
  $region38: #{gru_model_forward.1} parent=0 // pred_check
    _
  $region39: #{gru_model_forward.1} parent=0 // pred_check_branch
    %38 = sbr.rel (0) target = $region41
  $region40: #{gru_model_forward.1} parent=0 // pred_region
    _
  $region41: #{gru_model_forward.1} parent=0 // pred_fallthru
    _
  // Predicated region
  $region42: #{gru_model_forward.1} parent=0 // pred_check
    _
  $region43: #{gru_model_forward.1} parent=0 // pred_check_branch
    %40 = sbr.rel (0) target = $region45
  $region44: #{gru_model_forward.1} parent=0 // pred_region
    _
  $region45: #{gru_model_forward.1} parent=0 // pred_fallthru
    _
  // Predicated region
  $region46: #{gru_model_forward.1} parent=0 // pred_check
    _
  $region47: #{gru_model_forward.1} parent=0 // pred_check_branch
    %42 = sbr.rel (0) target = $region49
  $region48: #{gru_model_forward.1} parent=0 // pred_region
    _
  $region49: #{gru_model_forward.1} parent=0 // pred_fallthru
    _
  // Predicated region
  $region50: #{gru_model_forward.1} parent=0 // pred_check
    _
  $region51: #{gru_model_forward.1} parent=0 // pred_check_branch
    %44 = sbr.rel (0) target = $region53
  $region52: #{gru_model_forward.1} parent=0 // pred_region
    _
  $region53: #{gru_model_forward.1} parent=0 // pred_fallthru
    _
  // Predicated region
  $region54: #{gru_model_forward.1} parent=0 // pred_check
    _
  $region55: #{gru_model_forward.1} parent=0 // pred_check_branch
    %46 = sbr.rel (0) target = $region57
  $region56: #{gru_model_forward.1} parent=0 // pred_region
    _
  $region57: #{gru_model_forward.1} parent=0 // pred_fallthru
    _
  %v47 = vld [vmem:[%s0] sm:$0xff]
  %v48 = vld [vmem:[%s0 + $0x8] sm:$0xff]
  %v49 = vld [vmem:[%s0 + $0x10] sm:$0xff]
  %v50 = vld [vmem:[%s0 + $0x18] sm:$0xff]
  %v51 = vld [vmem:[%s0 + $0x20] sm:$0xff]
  %v52 = vld [vmem:[%s0 + $0x28] sm:$0xff]
  %v53 = vld [vmem:[%s0 + $0x30] sm:$0xff]
  %v54 = vld [vmem:[%s0 + $0x38] sm:$0xff]
  %v55 = vld [vmem:[%s2] sm:$0xff]
  %v56 = vld [vmem:[%s2 + $0x8] sm:$0xff]
  %v57 = vld [vmem:[%s2 + $0x10] sm:$0xff]
  %v58 = vld [vmem:[%s2 + $0x18] sm:$0xff]
  %v59 = vld [vmem:[%s2 + $0x20] sm:$0xff]
  %v60 = vld [vmem:[%s2 + $0x28] sm:$0xff]
  %v61 = vld [vmem:[%s2 + $0x30] sm:$0xff]
  %v62 = vld [vmem:[%s2 + $0x38] sm:$0xff]
  %v63 = vld [vmem:[%s2 + $0x40] sm:$0xff]
  %v64 = vld [vmem:[%s2 + $0x48] sm:$0xff]
  %v65 = vld [vmem:[%s2 + $0x50] sm:$0xff]
  %v66 = vld [vmem:[%s2 + $0x58] sm:$0xff]
  %v67 = vld [vmem:[%s2 + $0x60] sm:$0xff]
  %v68 = vld [vmem:[%s2 + $0x68] sm:$0xff]
  %v69 = vld [vmem:[%s2 + $0x70] sm:$0xff]
  %v70 = vld [vmem:[%s2 + $0x78] sm:$0xff]
  %v71 = vld [vmem:[%s4] sm:$0x1]
  %v73 = vperm.slane %v71, 0
  %75 = vmatpush.msra.mxu0 %v70
  %76 = vmatpush.msra.mxu0 %v69
  %77 = vmatpush.msra.mxu0 %v68
  %78 = vmatpush.msra.mxu0 %v67
  %79 = vmatpush.msra.mxu0 %v66
  %80 = vmatpush.msra.mxu0 %v65
  %81 = vmatpush.msra.mxu0 %v64
  %82 = vmatpush.msra.mxu0 %v63
  %83 = vmatpush.msra.mxu0 %v62
  %84 = vmatpush.msra.mxu0 %v61
  %85 = vmatpush.msra.mxu0 %v60
  %86 = vmatpush.msra.mxu0 %v59
  %87 = vmatpush.msra.mxu0 %v58
  %88 = vmatpush.msra.mxu0 %v57
  %89 = vmatpush.msra.mxu0 %v56
  %90 = vmatpush.msra.mxu0 %v55
  %91 = vmatmul.f32.gmra.mxu0 %v47
  %v92 = vpop.f32.mrf.mxu0
  %v93 = vadd.f32 %v73, %v92
  %94 = vmatmul.f32.gmra.mxu0 %v48
  %v95 = vpop.f32.mrf.mxu0
  %v96 = vadd.f32 %v73, %v95
  %97 = vmatmul.f32.gmra.mxu0 %v49
  %v98 = vpop.f32.mrf.mxu0
  %v99 = vadd.f32 %v73, %v98
  %100 = vmatmul.f32.gmra.mxu0 %v50
  %v101 = vpop.f32.mrf.mxu0
  %v102 = vadd.f32 %v73, %v101
  %103 = vmatmul.f32.gmra.mxu0 %v51
  %v104 = vpop.f32.mrf.mxu0
  %v105 = vadd.f32 %v73, %v104
  %106 = vmatmul.f32.gmra.mxu0 %v52
  %v107 = vpop.f32.mrf.mxu0
  %v108 = vadd.f32 %v73, %v107
  %109 = vmatmul.f32.gmra.mxu0 %v53
  %v110 = vpop.f32.mrf.mxu0
  %v111 = vadd.f32 %v73, %v110
  %112 = vmatmul.f32.gmra.mxu0 %v54
  %v113 = vpop.f32.mrf.mxu0
  %v114 = vadd.f32 %v73, %v113
  %115 = vdwg.mxu0
  %116 = vst [vmem:[#allocation2] sm:$0xff] %v93
  %117 = vst [vmem:[#allocation2 + $0x8] sm:$0xff] %v96
  %118 = vst [vmem:[#allocation2 + $0x10] sm:$0xff] %v99
  %119 = vst [vmem:[#allocation2 + $0x18] sm:$0xff] %v102
  %120 = vst [vmem:[#allocation2 + $0x20] sm:$0xff] %v105
  %121 = vst [vmem:[#allocation2 + $0x28] sm:$0xff] %v108
  %122 = vst [vmem:[#allocation2 + $0x30] sm:$0xff] %v111
  %123 = vst [vmem:[#allocation2 + $0x38] sm:$0xff] %v114
  %v124 = vld [vmem:[%s3] sm:$0xff]
  %v125 = vld [vmem:[%s3 + $0x8] sm:$0xff]
  %v126 = vld [vmem:[%s3 + $0x10] sm:$0xff]
  %v127 = vld [vmem:[%s3 + $0x18] sm:$0xff]
  %v128 = vld [vmem:[%s5] sm:$0x1]
  %v130 = vperm.slane %v128, 0
  %v132 = vld [vmem:[%s1] sm:$0xff]
  %v133 = vld [vmem:[#allocation2] sm:$0xff]
  %vm134 = vcmask 261120
  %v136 = vsel %vm134, %v132, 0
  %138 = vmatpush.msra.mxu0 0.0
  %139 = vmatpush.msra.mxu0 0.0
  %140 = vmatpush.msra.mxu0 0.0
  %141 = vmatpush.msra.mxu0 0.0
  %142 = vmatpush.msra.mxu0 0.0
  %143 = vmatpush.msra.mxu0 0.0
  %144 = vmatpush.msra.mxu0 0.0
  %145 = vmatpush.msra.mxu0 0.0
  %146 = vmatpush.msra.mxu0 0.0
  %147 = vmatpush.msra.mxu0 0.0
  %148 = vmatpush.msra.mxu0 0.0
  %149 = vmatpush.msra.mxu0 0.0
  %150 = vmatpush.msra.mxu0 %v127
  %151 = vmatpush.msra.mxu0 %v126
  %152 = vmatpush.msra.mxu0 %v125
  %153 = vmatpush.msra.mxu0 %v124
  %154 = vmatmul.f32.gmra.mxu0 %v136
  %v155 = vpop.f32.mrf.mxu0
  %v156 = vadd.f32 %v130, %v155
  %157 = vdwg.mxu0
  %v158 = vadd.f32 %v133, %v156
  %v159 = vxor.u32 %v158, 2147483648
  %v160 = vmul.f32 %v159, 1.442695
  %v161 = vpow.pop %v160
  %v162 = vadd.f32 %v161, 1.0
  %v163 = vrcp.pop %v162
  %v164 = vmul.f32 %v162, %v163
  %v165 = vsub.f32 1.0, %v164
  %v166 = vmul.f32 %v163, %v165
  %v167 = vadd.f32 %v163, %v166
  %vm168 = vweird.f32 %v162
  %vm169 = vweird.f32 %v163
  %vm170 = vmor %vm168, %vm169
  %v171 = vsel %vm170, %v163, %v167
  %v172 = vand.u32 2147483647, %v162
  %vm173 = vcmp.eq.f32.partialorder %v172, 8.507059e+37
  %v174 = vand.u32 %v162, 2147483648
  %v175 = vor.u32 1.1754944e-38, %v174
  %v176 = vsel %vm173, %v175, %v171
  %v177 = vmul.f32 1.0, %v176
  %179 = vrot.lane.b32.xlu0 %v156, 64
  %v180 = vpop.permute.xlu0 %179
  %v182 = vmul.f32 %v177, %v180
  %184 = vrot.lane.b32.xlu0 %v182, 64
  %v185 = vpop.permute.xlu0 %184
  %v187 = vadd.f32 %v133, %v185
  %v188 = vtanh.pop %v187
  %v189 = vsub.f32 1.0, %v177
  %191 = vrot.lane.b32.xlu0 %v188, 96
  %v192 = vpop.permute.xlu0 %191
  %v194 = vmul.f32 %v189, %v192
  %195 = vrot.lane.b32.xlu0 %v132, 32
  %v196 = vpop.permute.xlu0 %195
  %v198 = vmul.f32 %v177, %v196
  %v199 = vadd.f32 %v194, %v198
  %201 = vrot.lane.b32.xlu0 %v199, 96
  %v202 = vpop.permute.xlu0 %201
  %204 = vst.msk [vmem:[#allocation3] sm:$0xff] %vm134, %v202
  %s205 = scalar_lea.vmem [#allocation2], 8
  %v206 = vld [vmem:[%s205] sm:$0xff]
  %v207 = vsel %vm134, %v202, 0
  %209 = vmatpush.msra.mxu0 0.0
  %210 = vmatpush.msra.mxu0 0.0
  %211 = vmatpush.msra.mxu0 0.0
  %212 = vmatpush.msra.mxu0 0.0
  %213 = vmatpush.msra.mxu0 0.0
  %214 = vmatpush.msra.mxu0 0.0
  %215 = vmatpush.msra.mxu0 0.0
  %216 = vmatpush.msra.mxu0 0.0
  %217 = vmatpush.msra.mxu0 0.0
  %218 = vmatpush.msra.mxu0 0.0
  %219 = vmatpush.msra.mxu0 0.0
  %220 = vmatpush.msra.mxu0 0.0
  %221 = vmatpush.msra.mxu0 %v127
  %222 = vmatpush.msra.mxu0 %v126
  %223 = vmatpush.msra.mxu0 %v125
  %224 = vmatpush.msra.mxu0 %v124
  %225 = vmatmul.f32.gmra.mxu0 %v207
  %v226 = vpop.f32.mrf.mxu0
  %v227 = vadd.f32 %v130, %v226
  %228 = vdwg.mxu0
  %v229 = vadd.f32 %v206, %v227
  %v230 = vxor.u32 %v229, 2147483648
  %v231 = vmul.f32 %v230, 1.442695
  %v232 = vpow.pop %v231
  %v233 = vadd.f32 %v232, 1.0
  %v234 = vrcp.pop %v233
  %v235 = vmul.f32 %v233, %v234
  %v236 = vsub.f32 1.0, %v235
  %v237 = vmul.f32 %v234, %v236
  %v238 = vadd.f32 %v234, %v237
  %vm239 = vweird.f32 %v233
  %vm240 = vweird.f32 %v234
  %vm241 = vmor %vm239, %vm240
  %v242 = vsel %vm241, %v234, %v238
  %v243 = vand.u32 2147483647, %v233
  %vm244 = vcmp.eq.f32.partialorder %v243, 8.507059e+37
  %v245 = vand.u32 %v233, 2147483648
  %v246 = vor.u32 1.1754944e-38, %v245
  %v247 = vsel %vm244, %v246, %v242
  %v248 = vmul.f32 1.0, %v247
  %250 = vrot.lane.b32.xlu0 %v227, 64
  %v251 = vpop.permute.xlu0 %250
  %v253 = vmul.f32 %v248, %v251
  %255 = vrot.lane.b32.xlu0 %v253, 64
  %v256 = vpop.permute.xlu0 %255
  %v258 = vadd.f32 %v206, %v256
  %v259 = vtanh.pop %v258
  %v260 = vsub.f32 1.0, %v248
  %262 = vrot.lane.b32.xlu0 %v259, 96
  %v263 = vpop.permute.xlu0 %262
  %v265 = vmul.f32 %v260, %v263
  %v266 = vmul.f32 %v248, %v199
  %v267 = vadd.f32 %v265, %v266
  %269 = vrot.lane.b32.xlu0 %v267, 96
  %v270 = vpop.permute.xlu0 %269
  %s272 = scalar_lea.vmem [#allocation3], 8
  %273 = vst.msk [vmem:[%s272] sm:$0xff] %vm134, %v270
  %s274 = scalar_lea.vmem [#allocation2], 16
  %v275 = vld [vmem:[%s274] sm:$0xff]
  %v276 = vsel %vm134, %v270, 0
  %278 = vmatpush.msra.mxu0 0.0
  %279 = vmatpush.msra.mxu0 0.0
  %280 = vmatpush.msra.mxu0 0.0
  %281 = vmatpush.msra.mxu0 0.0
  %282 = vmatpush.msra.mxu0 0.0
  %283 = vmatpush.msra.mxu0 0.0
  %284 = vmatpush.msra.mxu0 0.0
  %285 = vmatpush.msra.mxu0 0.0
  %286 = vmatpush.msra.mxu0 0.0
  %287 = vmatpush.msra.mxu0 0.0
  %288 = vmatpush.msra.mxu0 0.0
  %289 = vmatpush.msra.mxu0 0.0
  %290 = vmatpush.msra.mxu0 %v127
  %291 = vmatpush.msra.mxu0 %v126
  %292 = vmatpush.msra.mxu0 %v125
  %293 = vmatpush.msra.mxu0 %v124
  %294 = vmatmul.f32.gmra.mxu0 %v276
  %v295 = vpop.f32.mrf.mxu0
  %v296 = vadd.f32 %v130, %v295
  %297 = vdwg.mxu0
  %v298 = vadd.f32 %v275, %v296
  %v299 = vxor.u32 %v298, 2147483648
  %v300 = vmul.f32 %v299, 1.442695
  %v301 = vpow.pop %v300
  %v302 = vadd.f32 %v301, 1.0
  %v303 = vrcp.pop %v302
  %v304 = vmul.f32 %v302, %v303
  %v305 = vsub.f32 1.0, %v304
  %v306 = vmul.f32 %v303, %v305
  %v307 = vadd.f32 %v303, %v306
  %vm308 = vweird.f32 %v302
  %vm309 = vweird.f32 %v303
  %vm310 = vmor %vm308, %vm309
  %v311 = vsel %vm310, %v303, %v307
  %v312 = vand.u32 2147483647, %v302
  %vm313 = vcmp.eq.f32.partialorder %v312, 8.507059e+37
  %v314 = vand.u32 %v302, 2147483648
  %v315 = vor.u32 1.1754944e-38, %v314
  %v316 = vsel %vm313, %v315, %v311
  %v317 = vmul.f32 1.0, %v316
  %319 = vrot.lane.b32.xlu0 %v296, 64
  %v320 = vpop.permute.xlu0 %319
  %v322 = vmul.f32 %v317, %v320
  %324 = vrot.lane.b32.xlu0 %v322, 64
  %v325 = vpop.permute.xlu0 %324
  %v327 = vadd.f32 %v275, %v325
  %v328 = vtanh.pop %v327
  %v329 = vsub.f32 1.0, %v317
  %331 = vrot.lane.b32.xlu0 %v328, 96
  %v332 = vpop.permute.xlu0 %331
  %v334 = vmul.f32 %v329, %v332
  %v335 = vmul.f32 %v317, %v267
  %v336 = vadd.f32 %v334, %v335
  %338 = vrot.lane.b32.xlu0 %v336, 96
  %v339 = vpop.permute.xlu0 %338
  %s341 = scalar_lea.vmem [#allocation3], 16
  %342 = vst.msk [vmem:[%s341] sm:$0xff] %vm134, %v339
  %s343 = scalar_lea.vmem [#allocation2], 24
  %v344 = vld [vmem:[%s343] sm:$0xff]
  %v345 = vsel %vm134, %v339, 0
  %347 = vmatpush.msra.mxu0 0.0
  %348 = vmatpush.msra.mxu0 0.0
  %349 = vmatpush.msra.mxu0 0.0
  %350 = vmatpush.msra.mxu0 0.0
  %351 = vmatpush.msra.mxu0 0.0
  %352 = vmatpush.msra.mxu0 0.0
  %353 = vmatpush.msra.mxu0 0.0
  %354 = vmatpush.msra.mxu0 0.0
  %355 = vmatpush.msra.mxu0 0.0
  %356 = vmatpush.msra.mxu0 0.0
  %357 = vmatpush.msra.mxu0 0.0
  %358 = vmatpush.msra.mxu0 0.0
  %359 = vmatpush.msra.mxu0 %v127
  %360 = vmatpush.msra.mxu0 %v126
  %361 = vmatpush.msra.mxu0 %v125
  %362 = vmatpush.msra.mxu0 %v124
  %363 = vmatmul.f32.gmra.mxu0 %v345
  %v364 = vpop.f32.mrf.mxu0
  %v365 = vadd.f32 %v130, %v364
  %366 = vdwg.mxu0
  %v367 = vadd.f32 %v344, %v365
  %v368 = vxor.u32 %v367, 2147483648
  %v369 = vmul.f32 %v368, 1.442695
  %v370 = vpow.pop %v369
  %v371 = vadd.f32 %v370, 1.0
  %v372 = vrcp.pop %v371
  %v373 = vmul.f32 %v371, %v372
  %v374 = vsub.f32 1.0, %v373
  %v375 = vmul.f32 %v372, %v374
  %v376 = vadd.f32 %v372, %v375
  %vm377 = vweird.f32 %v371
  %vm378 = vweird.f32 %v372
  %vm379 = vmor %vm377, %vm378
  %v380 = vsel %vm379, %v372, %v376
  %v381 = vand.u32 2147483647, %v371
  %vm382 = vcmp.eq.f32.partialorder %v381, 8.507059e+37
  %v383 = vand.u32 %v371, 2147483648
  %v384 = vor.u32 1.1754944e-38, %v383
  %v385 = vsel %vm382, %v384, %v380
  %v386 = vmul.f32 1.0, %v385
  %388 = vrot.lane.b32.xlu0 %v365, 64
  %v389 = vpop.permute.xlu0 %388
  %v391 = vmul.f32 %v386, %v389
  %393 = vrot.lane.b32.xlu0 %v391, 64
  %v394 = vpop.permute.xlu0 %393
  %v396 = vadd.f32 %v344, %v394
  %v397 = vtanh.pop %v396
  %v398 = vsub.f32 1.0, %v386
  %400 = vrot.lane.b32.xlu0 %v397, 96
  %v401 = vpop.permute.xlu0 %400
  %v403 = vmul.f32 %v398, %v401
  %v404 = vmul.f32 %v386, %v336
  %v405 = vadd.f32 %v403, %v404
  %407 = vrot.lane.b32.xlu0 %v405, 96
  %v408 = vpop.permute.xlu0 %407
  %s410 = scalar_lea.vmem [#allocation3], 24
  %411 = vst.msk [vmem:[%s410] sm:$0xff] %vm134, %v408
  %s412 = scalar_lea.vmem [#allocation2], 32
  %v413 = vld [vmem:[%s412] sm:$0xff]
  %v414 = vsel %vm134, %v408, 0
  %416 = vmatpush.msra.mxu0 0.0
  %417 = vmatpush.msra.mxu0 0.0
  %418 = vmatpush.msra.mxu0 0.0
  %419 = vmatpush.msra.mxu0 0.0
  %420 = vmatpush.msra.mxu0 0.0
  %421 = vmatpush.msra.mxu0 0.0
  %422 = vmatpush.msra.mxu0 0.0
  %423 = vmatpush.msra.mxu0 0.0
  %424 = vmatpush.msra.mxu0 0.0
  %425 = vmatpush.msra.mxu0 0.0
  %426 = vmatpush.msra.mxu0 0.0
  %427 = vmatpush.msra.mxu0 0.0
  %428 = vmatpush.msra.mxu0 %v127
  %429 = vmatpush.msra.mxu0 %v126
  %430 = vmatpush.msra.mxu0 %v125
  %431 = vmatpush.msra.mxu0 %v124
  %432 = vmatmul.f32.gmra.mxu0 %v414
  %v433 = vpop.f32.mrf.mxu0
  %v434 = vadd.f32 %v130, %v433
  %435 = vdwg.mxu0
  %v436 = vadd.f32 %v413, %v434
  %v437 = vxor.u32 %v436, 2147483648
  %v438 = vmul.f32 %v437, 1.442695
  %v439 = vpow.pop %v438
  %v440 = vadd.f32 %v439, 1.0
  %v441 = vrcp.pop %v440
  %v442 = vmul.f32 %v440, %v441
  %v443 = vsub.f32 1.0, %v442
  %v444 = vmul.f32 %v441, %v443
  %v445 = vadd.f32 %v441, %v444
  %vm446 = vweird.f32 %v440
  %vm447 = vweird.f32 %v441
  %vm448 = vmor %vm446, %vm447
  %v449 = vsel %vm448, %v441, %v445
  %v450 = vand.u32 2147483647, %v440
  %vm451 = vcmp.eq.f32.partialorder %v450, 8.507059e+37
  %v452 = vand.u32 %v440, 2147483648
  %v453 = vor.u32 1.1754944e-38, %v452
  %v454 = vsel %vm451, %v453, %v449
  %v455 = vmul.f32 1.0, %v454
  %457 = vrot.lane.b32.xlu0 %v434, 64
  %v458 = vpop.permute.xlu0 %457
  %v460 = vmul.f32 %v455, %v458
  %462 = vrot.lane.b32.xlu0 %v460, 64
  %v463 = vpop.permute.xlu0 %462
  %v465 = vadd.f32 %v413, %v463
  %v466 = vtanh.pop %v465
  %v467 = vsub.f32 1.0, %v455
  %469 = vrot.lane.b32.xlu0 %v466, 96
  %v470 = vpop.permute.xlu0 %469
  %v472 = vmul.f32 %v467, %v470
  %v473 = vmul.f32 %v455, %v405
  %v474 = vadd.f32 %v472, %v473
  %476 = vrot.lane.b32.xlu0 %v474, 96
  %v477 = vpop.permute.xlu0 %476
  %s479 = scalar_lea.vmem [#allocation3], 32
  %480 = vst.msk [vmem:[%s479] sm:$0xff] %vm134, %v477
  %s481 = scalar_lea.vmem [#allocation2], 40
  %v482 = vld [vmem:[%s481] sm:$0xff]
  %v483 = vsel %vm134, %v477, 0
  %485 = vmatpush.msra.mxu0 0.0
  %486 = vmatpush.msra.mxu0 0.0
  %487 = vmatpush.msra.mxu0 0.0
  %488 = vmatpush.msra.mxu0 0.0
  %489 = vmatpush.msra.mxu0 0.0
  %490 = vmatpush.msra.mxu0 0.0
  %491 = vmatpush.msra.mxu0 0.0
  %492 = vmatpush.msra.mxu0 0.0
  %493 = vmatpush.msra.mxu0 0.0
  %494 = vmatpush.msra.mxu0 0.0
  %495 = vmatpush.msra.mxu0 0.0
  %496 = vmatpush.msra.mxu0 0.0
  %497 = vmatpush.msra.mxu0 %v127
  %498 = vmatpush.msra.mxu0 %v126
  %499 = vmatpush.msra.mxu0 %v125
  %500 = vmatpush.msra.mxu0 %v124
  %501 = vmatmul.f32.gmra.mxu0 %v483
  %v502 = vpop.f32.mrf.mxu0
  %v503 = vadd.f32 %v130, %v502
  %504 = vdwg.mxu0
  %v505 = vadd.f32 %v482, %v503
  %v506 = vxor.u32 %v505, 2147483648
  %v507 = vmul.f32 %v506, 1.442695
  %v508 = vpow.pop %v507
  %v509 = vadd.f32 %v508, 1.0
  %v510 = vrcp.pop %v509
  %v511 = vmul.f32 %v509, %v510
  %v512 = vsub.f32 1.0, %v511
  %v513 = vmul.f32 %v510, %v512
  %v514 = vadd.f32 %v510, %v513
  %vm515 = vweird.f32 %v509
  %vm516 = vweird.f32 %v510
  %vm517 = vmor %vm515, %vm516
  %v518 = vsel %vm517, %v510, %v514
  %v519 = vand.u32 2147483647, %v509
  %vm520 = vcmp.eq.f32.partialorder %v519, 8.507059e+37
  %v521 = vand.u32 %v509, 2147483648
  %v522 = vor.u32 1.1754944e-38, %v521
  %v523 = vsel %vm520, %v522, %v518
  %v524 = vmul.f32 1.0, %v523
  %526 = vrot.lane.b32.xlu0 %v503, 64
  %v527 = vpop.permute.xlu0 %526
  %v529 = vmul.f32 %v524, %v527
  %531 = vrot.lane.b32.xlu0 %v529, 64
  %v532 = vpop.permute.xlu0 %531
  %v534 = vadd.f32 %v482, %v532
  %v535 = vtanh.pop %v534
  %v536 = vsub.f32 1.0, %v524
  %538 = vrot.lane.b32.xlu0 %v535, 96
  %v539 = vpop.permute.xlu0 %538
  %v541 = vmul.f32 %v536, %v539
  %v542 = vmul.f32 %v524, %v474
  %v543 = vadd.f32 %v541, %v542
  %545 = vrot.lane.b32.xlu0 %v543, 96
  %v546 = vpop.permute.xlu0 %545
  %s548 = scalar_lea.vmem [#allocation3], 40
  %549 = vst.msk [vmem:[%s548] sm:$0xff] %vm134, %v546
  %s550 = scalar_lea.vmem [#allocation2], 48
  %v551 = vld [vmem:[%s550] sm:$0xff]
  %v552 = vsel %vm134, %v546, 0
  %554 = vmatpush.msra.mxu0 0.0
  %555 = vmatpush.msra.mxu0 0.0
  %556 = vmatpush.msra.mxu0 0.0
  %557 = vmatpush.msra.mxu0 0.0
  %558 = vmatpush.msra.mxu0 0.0
  %559 = vmatpush.msra.mxu0 0.0
  %560 = vmatpush.msra.mxu0 0.0
  %561 = vmatpush.msra.mxu0 0.0
  %562 = vmatpush.msra.mxu0 0.0
  %563 = vmatpush.msra.mxu0 0.0
  %564 = vmatpush.msra.mxu0 0.0
  %565 = vmatpush.msra.mxu0 0.0
  %566 = vmatpush.msra.mxu0 %v127
  %567 = vmatpush.msra.mxu0 %v126
  %568 = vmatpush.msra.mxu0 %v125
  %569 = vmatpush.msra.mxu0 %v124
  %570 = vmatmul.f32.gmra.mxu0 %v552
  %v571 = vpop.f32.mrf.mxu0
  %v572 = vadd.f32 %v130, %v571
  %573 = vdwg.mxu0
  %v574 = vadd.f32 %v551, %v572
  %v575 = vxor.u32 %v574, 2147483648
  %v576 = vmul.f32 %v575, 1.442695
  %v577 = vpow.pop %v576
  %v578 = vadd.f32 %v577, 1.0
  %v579 = vrcp.pop %v578
  %v580 = vmul.f32 %v578, %v579
  %v581 = vsub.f32 1.0, %v580
  %v582 = vmul.f32 %v579, %v581
  %v583 = vadd.f32 %v579, %v582
  %vm584 = vweird.f32 %v578
  %vm585 = vweird.f32 %v579
  %vm586 = vmor %vm584, %vm585
  %v587 = vsel %vm586, %v579, %v583
  %v588 = vand.u32 2147483647, %v578
  %vm589 = vcmp.eq.f32.partialorder %v588, 8.507059e+37
  %v590 = vand.u32 %v578, 2147483648
  %v591 = vor.u32 1.1754944e-38, %v590
  %v592 = vsel %vm589, %v591, %v587
  %v593 = vmul.f32 1.0, %v592
  %595 = vrot.lane.b32.xlu0 %v572, 64
  %v596 = vpop.permute.xlu0 %595
  %v598 = vmul.f32 %v593, %v596
  %600 = vrot.lane.b32.xlu0 %v598, 64
  %v601 = vpop.permute.xlu0 %600
  %v603 = vadd.f32 %v551, %v601
  %v604 = vtanh.pop %v603
  %v605 = vsub.f32 1.0, %v593
  %607 = vrot.lane.b32.xlu0 %v604, 96
  %v608 = vpop.permute.xlu0 %607
  %v610 = vmul.f32 %v605, %v608
  %v611 = vmul.f32 %v593, %v543
  %v612 = vadd.f32 %v610, %v611
  %614 = vrot.lane.b32.xlu0 %v612, 96
  %v615 = vpop.permute.xlu0 %614
  %s617 = scalar_lea.vmem [#allocation3], 48
  %618 = vst.msk [vmem:[%s617] sm:$0xff] %vm134, %v615
  %s619 = scalar_lea.vmem [#allocation2], 56
  %v620 = vld [vmem:[%s619] sm:$0xff]
  %v621 = vsel %vm134, %v615, 0
  %623 = vmatpush.msra.mxu0 0.0
  %624 = vmatpush.msra.mxu0 0.0
  %625 = vmatpush.msra.mxu0 0.0
  %626 = vmatpush.msra.mxu0 0.0
  %627 = vmatpush.msra.mxu0 0.0
  %628 = vmatpush.msra.mxu0 0.0
  %629 = vmatpush.msra.mxu0 0.0
  %630 = vmatpush.msra.mxu0 0.0
  %631 = vmatpush.msra.mxu0 0.0
  %632 = vmatpush.msra.mxu0 0.0
  %633 = vmatpush.msra.mxu0 0.0
  %634 = vmatpush.msra.mxu0 0.0
  %635 = vmatpush.msra.mxu0 %v127
  %636 = vmatpush.msra.mxu0 %v126
  %637 = vmatpush.msra.mxu0 %v125
  %638 = vmatpush.msra.mxu0 %v124
  %639 = vmatmul.f32.gmra.mxu0 %v621
  %v640 = vpop.f32.mrf.mxu0
  %v641 = vadd.f32 %v130, %v640
  %642 = vdwg.mxu0
  %v643 = vadd.f32 %v620, %v641
  %v644 = vxor.u32 %v643, 2147483648
  %v645 = vmul.f32 %v644, 1.442695
  %v646 = vpow.pop %v645
  %v647 = vadd.f32 %v646, 1.0
  %v648 = vrcp.pop %v647
  %v649 = vmul.f32 %v647, %v648
  %v650 = vsub.f32 1.0, %v649
  %v651 = vmul.f32 %v648, %v650
  %v652 = vadd.f32 %v648, %v651
  %vm653 = vweird.f32 %v647
  %vm654 = vweird.f32 %v648
  %vm655 = vmor %vm653, %vm654
  %v656 = vsel %vm655, %v648, %v652
  %v657 = vand.u32 2147483647, %v647
  %vm658 = vcmp.eq.f32.partialorder %v657, 8.507059e+37
  %v659 = vand.u32 %v647, 2147483648
  %v660 = vor.u32 1.1754944e-38, %v659
  %v661 = vsel %vm658, %v660, %v656
  %v662 = vmul.f32 1.0, %v661
  %664 = vrot.lane.b32.xlu0 %v641, 64
  %v665 = vpop.permute.xlu0 %664
  %v667 = vmul.f32 %v662, %v665
  %669 = vrot.lane.b32.xlu0 %v667, 64
  %v670 = vpop.permute.xlu0 %669
  %v672 = vadd.f32 %v620, %v670
  %v673 = vtanh.pop %v672
  %v674 = vsub.f32 1.0, %v662
  %676 = vrot.lane.b32.xlu0 %v673, 96
  %v677 = vpop.permute.xlu0 %676
  %v679 = vmul.f32 %v674, %v677
  %v680 = vmul.f32 %v662, %v612
  %v681 = vadd.f32 %v679, %v680
  %683 = vrot.lane.b32.xlu0 %v681, 96
  %v684 = vpop.permute.xlu0 %683
  %s686 = scalar_lea.vmem [#allocation3], 56
  %687 = vst.msk [vmem:[%s686] sm:$0xff] %vm134, %v684
  %v688 = vld [vmem:[#allocation3] sm:$0xff]
  %v689 = vld [vmem:[#allocation3 + $0x8] sm:$0xff]
  %v690 = vld [vmem:[#allocation3 + $0x10] sm:$0xff]
  %v691 = vld [vmem:[#allocation3 + $0x18] sm:$0xff]
  %v692 = vld [vmem:[#allocation3 + $0x20] sm:$0xff]
  %v693 = vld [vmem:[#allocation3 + $0x28] sm:$0xff]
  %v694 = vld [vmem:[#allocation3 + $0x30] sm:$0xff]
  %v695 = vld [vmem:[#allocation3 + $0x38] sm:$0xff]
  %v696 = vld [vmem:[%s6] sm:$0xff]
  %v697 = vld [vmem:[%s6 + $0x8] sm:$0xff]
  %v698 = vld [vmem:[%s6 + $0x10] sm:$0xff]
  %v699 = vld [vmem:[%s6 + $0x18] sm:$0xff]
  %v700 = vld [vmem:[%s8] sm:$0x1]
  %v702 = vperm.slane %v700, 0
  %v705 = vsel %vm134, %v688, 0
  %v708 = vsel %vm134, %v689, 0
  %v711 = vsel %vm134, %v690, 0
  %v714 = vsel %vm134, %v691, 0
  %v717 = vsel %vm134, %v692, 0
  %v720 = vsel %vm134, %v693, 0
  %v723 = vsel %vm134, %v694, 0
  %v726 = vsel %vm134, %v695, 0
  %728 = vmatpush.msra.mxu0 0.0
  %729 = vmatpush.msra.mxu0 0.0
  %730 = vmatpush.msra.mxu0 0.0
  %731 = vmatpush.msra.mxu0 0.0
  %732 = vmatpush.msra.mxu0 0.0
  %733 = vmatpush.msra.mxu0 0.0
  %734 = vmatpush.msra.mxu0 0.0
  %735 = vmatpush.msra.mxu0 0.0
  %736 = vmatpush.msra.mxu0 0.0
  %737 = vmatpush.msra.mxu0 0.0
  %738 = vmatpush.msra.mxu0 0.0
  %739 = vmatpush.msra.mxu0 0.0
  %740 = vmatpush.msra.mxu0 %v699
  %741 = vmatpush.msra.mxu0 %v698
  %742 = vmatpush.msra.mxu0 %v697
  %743 = vmatpush.msra.mxu0 %v696
  %744 = vmatmul.f32.gmra.mxu0 %v705
  %v745 = vpop.f32.mrf.mxu0
  %v746 = vadd.f32 %v702, %v745
  %747 = vmatmul.f32.gmra.mxu0 %v708
  %v748 = vpop.f32.mrf.mxu0
  %v749 = vadd.f32 %v702, %v748
  %750 = vmatmul.f32.gmra.mxu0 %v711
  %v751 = vpop.f32.mrf.mxu0
  %v752 = vadd.f32 %v702, %v751
  %753 = vmatmul.f32.gmra.mxu0 %v714
  %v754 = vpop.f32.mrf.mxu0
  %v755 = vadd.f32 %v702, %v754
  %756 = vmatmul.f32.gmra.mxu0 %v717
  %v757 = vpop.f32.mrf.mxu0
  %v758 = vadd.f32 %v702, %v757
  %759 = vmatmul.f32.gmra.mxu0 %v720
  %v760 = vpop.f32.mrf.mxu0
  %v761 = vadd.f32 %v702, %v760
  %762 = vmatmul.f32.gmra.mxu0 %v723
  %v763 = vpop.f32.mrf.mxu0
  %v764 = vadd.f32 %v702, %v763
  %765 = vmatmul.f32.gmra.mxu0 %v726
  %v766 = vpop.f32.mrf.mxu0
  %v767 = vadd.f32 %v702, %v766
  %768 = vdwg.mxu0
  %769 = vst [vmem:[#allocation2] sm:$0xff] %v746
  %770 = vst [vmem:[#allocation2 + $0x8] sm:$0xff] %v749
  %771 = vst [vmem:[#allocation2 + $0x10] sm:$0xff] %v752
  %772 = vst [vmem:[#allocation2 + $0x18] sm:$0xff] %v755
  %773 = vst [vmem:[#allocation2 + $0x20] sm:$0xff] %v758
  %774 = vst [vmem:[#allocation2 + $0x28] sm:$0xff] %v761
  %775 = vst [vmem:[#allocation2 + $0x30] sm:$0xff] %v764
  %776 = vst [vmem:[#allocation2 + $0x38] sm:$0xff] %v767
  %v777 = vld [vmem:[%s7] sm:$0xff]
  %v778 = vld [vmem:[%s7 + $0x8] sm:$0xff]
  %v779 = vld [vmem:[%s7 + $0x10] sm:$0xff]
  %v780 = vld [vmem:[%s7 + $0x18] sm:$0xff]
  %v781 = vld [vmem:[%s9] sm:$0x1]
  %v783 = vperm.slane %v781, 0
  %s785 = scalar_lea.vmem %s1, 8
  %v786 = vld [vmem:[%s785] sm:$0xff]
  %v787 = vld [vmem:[#allocation2] sm:$0xff]
  %v789 = vsel %vm134, %v786, 0
  %791 = vmatpush.msra.mxu0 0.0
  %792 = vmatpush.msra.mxu0 0.0
  %793 = vmatpush.msra.mxu0 0.0
  %794 = vmatpush.msra.mxu0 0.0
  %795 = vmatpush.msra.mxu0 0.0
  %796 = vmatpush.msra.mxu0 0.0
  %797 = vmatpush.msra.mxu0 0.0
  %798 = vmatpush.msra.mxu0 0.0
  %799 = vmatpush.msra.mxu0 0.0
  %800 = vmatpush.msra.mxu0 0.0
  %801 = vmatpush.msra.mxu0 0.0
  %802 = vmatpush.msra.mxu0 0.0
  %803 = vmatpush.msra.mxu0 %v780
  %804 = vmatpush.msra.mxu0 %v779
  %805 = vmatpush.msra.mxu0 %v778
  %806 = vmatpush.msra.mxu0 %v777
  %807 = vmatmul.f32.gmra.mxu0 %v789
  %v808 = vpop.f32.mrf.mxu0
  %v809 = vadd.f32 %v783, %v808
  %810 = vdwg.mxu0
  %v811 = vadd.f32 %v787, %v809
  %v812 = vxor.u32 %v811, 2147483648
  %v813 = vmul.f32 %v812, 1.442695
  %v814 = vpow.pop %v813
  %v815 = vadd.f32 %v814, 1.0
  %v816 = vrcp.pop %v815
  %v817 = vmul.f32 %v815, %v816
  %v818 = vsub.f32 1.0, %v817
  %v819 = vmul.f32 %v816, %v818
  %v820 = vadd.f32 %v816, %v819
  %vm821 = vweird.f32 %v815
  %vm822 = vweird.f32 %v816
  %vm823 = vmor %vm821, %vm822
  %v824 = vsel %vm823, %v816, %v820
  %v825 = vand.u32 2147483647, %v815
  %vm826 = vcmp.eq.f32.partialorder %v825, 8.507059e+37
  %v827 = vand.u32 %v815, 2147483648
  %v828 = vor.u32 1.1754944e-38, %v827
  %v829 = vsel %vm826, %v828, %v824
  %v830 = vmul.f32 1.0, %v829
  %832 = vrot.lane.b32.xlu0 %v809, 64
  %v833 = vpop.permute.xlu0 %832
  %v835 = vmul.f32 %v830, %v833
  %837 = vrot.lane.b32.xlu0 %v835, 64
  %v838 = vpop.permute.xlu0 %837
  %v840 = vadd.f32 %v787, %v838
  %v841 = vtanh.pop %v840
  %v842 = vsub.f32 1.0, %v830
  %844 = vrot.lane.b32.xlu0 %v841, 96
  %v845 = vpop.permute.xlu0 %844
  %v847 = vmul.f32 %v842, %v845
  %848 = vrot.lane.b32.xlu0 %v786, 32
  %v849 = vpop.permute.xlu0 %848
  %v851 = vmul.f32 %v830, %v849
  %v852 = vadd.f32 %v847, %v851
  %854 = vrot.lane.b32.xlu0 %v852, 96
  %v855 = vpop.permute.xlu0 %854
  %857 = vst.msk [vmem:[#allocation3] sm:$0xff] %vm134, %v855
  %v858 = vld [vmem:[%s205] sm:$0xff]
  %v859 = vsel %vm134, %v855, 0
  %861 = vmatpush.msra.mxu0 0.0
  %862 = vmatpush.msra.mxu0 0.0
  %863 = vmatpush.msra.mxu0 0.0
  %864 = vmatpush.msra.mxu0 0.0
  %865 = vmatpush.msra.mxu0 0.0
  %866 = vmatpush.msra.mxu0 0.0
  %867 = vmatpush.msra.mxu0 0.0
  %868 = vmatpush.msra.mxu0 0.0
  %869 = vmatpush.msra.mxu0 0.0
  %870 = vmatpush.msra.mxu0 0.0
  %871 = vmatpush.msra.mxu0 0.0
  %872 = vmatpush.msra.mxu0 0.0
  %873 = vmatpush.msra.mxu0 %v780
  %874 = vmatpush.msra.mxu0 %v779
  %875 = vmatpush.msra.mxu0 %v778
  %876 = vmatpush.msra.mxu0 %v777
  %877 = vmatmul.f32.gmra.mxu0 %v859
  %v878 = vpop.f32.mrf.mxu0
  %v879 = vadd.f32 %v783, %v878
  %880 = vdwg.mxu0
  %v881 = vadd.f32 %v858, %v879
  %v882 = vxor.u32 %v881, 2147483648
  %v883 = vmul.f32 %v882, 1.442695
  %v884 = vpow.pop %v883
  %v885 = vadd.f32 %v884, 1.0
  %v886 = vrcp.pop %v885
  %v887 = vmul.f32 %v885, %v886
  %v888 = vsub.f32 1.0, %v887
  %v889 = vmul.f32 %v886, %v888
  %v890 = vadd.f32 %v886, %v889
  %vm891 = vweird.f32 %v885
  %vm892 = vweird.f32 %v886
  %vm893 = vmor %vm891, %vm892
  %v894 = vsel %vm893, %v886, %v890
  %v895 = vand.u32 2147483647, %v885
  %vm896 = vcmp.eq.f32.partialorder %v895, 8.507059e+37
  %v897 = vand.u32 %v885, 2147483648
  %v898 = vor.u32 1.1754944e-38, %v897
  %v899 = vsel %vm896, %v898, %v894
  %v900 = vmul.f32 1.0, %v899
  %902 = vrot.lane.b32.xlu0 %v879, 64
  %v903 = vpop.permute.xlu0 %902
  %v905 = vmul.f32 %v900, %v903
  %907 = vrot.lane.b32.xlu0 %v905, 64
  %v908 = vpop.permute.xlu0 %907
  %v910 = vadd.f32 %v858, %v908
  %v911 = vtanh.pop %v910
  %v912 = vsub.f32 1.0, %v900
  %914 = vrot.lane.b32.xlu0 %v911, 96
  %v915 = vpop.permute.xlu0 %914
  %v917 = vmul.f32 %v912, %v915
  %v918 = vmul.f32 %v900, %v852
  %v919 = vadd.f32 %v917, %v918
  %921 = vrot.lane.b32.xlu0 %v919, 96
  %v922 = vpop.permute.xlu0 %921
  %924 = vst.msk [vmem:[%s272] sm:$0xff] %vm134, %v922
  %v925 = vld [vmem:[%s274] sm:$0xff]
  %v926 = vsel %vm134, %v922, 0
  %928 = vmatpush.msra.mxu0 0.0
  %929 = vmatpush.msra.mxu0 0.0
  %930 = vmatpush.msra.mxu0 0.0
  %931 = vmatpush.msra.mxu0 0.0
  %932 = vmatpush.msra.mxu0 0.0
  %933 = vmatpush.msra.mxu0 0.0
  %934 = vmatpush.msra.mxu0 0.0
  %935 = vmatpush.msra.mxu0 0.0
  %936 = vmatpush.msra.mxu0 0.0
  %937 = vmatpush.msra.mxu0 0.0
  %938 = vmatpush.msra.mxu0 0.0
  %939 = vmatpush.msra.mxu0 0.0
  %940 = vmatpush.msra.mxu0 %v780
  %941 = vmatpush.msra.mxu0 %v779
  %942 = vmatpush.msra.mxu0 %v778
  %943 = vmatpush.msra.mxu0 %v777
  %944 = vmatmul.f32.gmra.mxu0 %v926
  %v945 = vpop.f32.mrf.mxu0
  %v946 = vadd.f32 %v783, %v945
  %947 = vdwg.mxu0
  %v948 = vadd.f32 %v925, %v946
  %v949 = vxor.u32 %v948, 2147483648
  %v950 = vmul.f32 %v949, 1.442695
  %v951 = vpow.pop %v950
  %v952 = vadd.f32 %v951, 1.0
  %v953 = vrcp.pop %v952
  %v954 = vmul.f32 %v952, %v953
  %v955 = vsub.f32 1.0, %v954
  %v956 = vmul.f32 %v953, %v955
  %v957 = vadd.f32 %v953, %v956
  %vm958 = vweird.f32 %v952
  %vm959 = vweird.f32 %v953
  %vm960 = vmor %vm958, %vm959
  %v961 = vsel %vm960, %v953, %v957
  %v962 = vand.u32 2147483647, %v952
  %vm963 = vcmp.eq.f32.partialorder %v962, 8.507059e+37
  %v964 = vand.u32 %v952, 2147483648
  %v965 = vor.u32 1.1754944e-38, %v964
  %v966 = vsel %vm963, %v965, %v961
  %v967 = vmul.f32 1.0, %v966
  %969 = vrot.lane.b32.xlu0 %v946, 64
  %v970 = vpop.permute.xlu0 %969
  %v972 = vmul.f32 %v967, %v970
  %974 = vrot.lane.b32.xlu0 %v972, 64
  %v975 = vpop.permute.xlu0 %974
  %v977 = vadd.f32 %v925, %v975
  %v978 = vtanh.pop %v977
  %v979 = vsub.f32 1.0, %v967
  %981 = vrot.lane.b32.xlu0 %v978, 96
  %v982 = vpop.permute.xlu0 %981
  %v984 = vmul.f32 %v979, %v982
  %v985 = vmul.f32 %v967, %v919
  %v986 = vadd.f32 %v984, %v985
  %988 = vrot.lane.b32.xlu0 %v986, 96
  %v989 = vpop.permute.xlu0 %988
  %991 = vst.msk [vmem:[%s341] sm:$0xff] %vm134, %v989
  %v992 = vld [vmem:[%s343] sm:$0xff]
  %v993 = vsel %vm134, %v989, 0
  %995 = vmatpush.msra.mxu0 0.0
  %996 = vmatpush.msra.mxu0 0.0
  %997 = vmatpush.msra.mxu0 0.0
  %998 = vmatpush.msra.mxu0 0.0
  %999 = vmatpush.msra.mxu0 0.0
  %1000 = vmatpush.msra.mxu0 0.0
  %1001 = vmatpush.msra.mxu0 0.0
  %1002 = vmatpush.msra.mxu0 0.0
  %1003 = vmatpush.msra.mxu0 0.0
  %1004 = vmatpush.msra.mxu0 0.0
  %1005 = vmatpush.msra.mxu0 0.0
  %1006 = vmatpush.msra.mxu0 0.0
  %1007 = vmatpush.msra.mxu0 %v780
  %1008 = vmatpush.msra.mxu0 %v779
  %1009 = vmatpush.msra.mxu0 %v778
  %1010 = vmatpush.msra.mxu0 %v777
  %1011 = vmatmul.f32.gmra.mxu0 %v993
  %v1012 = vpop.f32.mrf.mxu0
  %v1013 = vadd.f32 %v783, %v1012
  %1014 = vdwg.mxu0
  %v1015 = vadd.f32 %v992, %v1013
  %v1016 = vxor.u32 %v1015, 2147483648
  %v1017 = vmul.f32 %v1016, 1.442695
  %v1018 = vpow.pop %v1017
  %v1019 = vadd.f32 %v1018, 1.0
  %v1020 = vrcp.pop %v1019
  %v1021 = vmul.f32 %v1019, %v1020
  %v1022 = vsub.f32 1.0, %v1021
  %v1023 = vmul.f32 %v1020, %v1022
  %v1024 = vadd.f32 %v1020, %v1023
  %vm1025 = vweird.f32 %v1019
  %vm1026 = vweird.f32 %v1020
  %vm1027 = vmor %vm1025, %vm1026
  %v1028 = vsel %vm1027, %v1020, %v1024
  %v1029 = vand.u32 2147483647, %v1019
  %vm1030 = vcmp.eq.f32.partialorder %v1029, 8.507059e+37
  %v1031 = vand.u32 %v1019, 2147483648
  %v1032 = vor.u32 1.1754944e-38, %v1031
  %v1033 = vsel %vm1030, %v1032, %v1028
  %v1034 = vmul.f32 1.0, %v1033
  %1036 = vrot.lane.b32.xlu0 %v1013, 64
  %v1037 = vpop.permute.xlu0 %1036
  %v1039 = vmul.f32 %v1034, %v1037
  %1041 = vrot.lane.b32.xlu0 %v1039, 64
  %v1042 = vpop.permute.xlu0 %1041
  %v1044 = vadd.f32 %v992, %v1042
  %v1045 = vtanh.pop %v1044
  %v1046 = vsub.f32 1.0, %v1034
  %1048 = vrot.lane.b32.xlu0 %v1045, 96
  %v1049 = vpop.permute.xlu0 %1048
  %v1051 = vmul.f32 %v1046, %v1049
  %v1052 = vmul.f32 %v1034, %v986
  %v1053 = vadd.f32 %v1051, %v1052
  %1055 = vrot.lane.b32.xlu0 %v1053, 96
  %v1056 = vpop.permute.xlu0 %1055
  %1058 = vst.msk [vmem:[%s410] sm:$0xff] %vm134, %v1056
  %v1059 = vld [vmem:[%s412] sm:$0xff]
  %v1060 = vsel %vm134, %v1056, 0
  %1062 = vmatpush.msra.mxu0 0.0
  %1063 = vmatpush.msra.mxu0 0.0
  %1064 = vmatpush.msra.mxu0 0.0
  %1065 = vmatpush.msra.mxu0 0.0
  %1066 = vmatpush.msra.mxu0 0.0
  %1067 = vmatpush.msra.mxu0 0.0
  %1068 = vmatpush.msra.mxu0 0.0
  %1069 = vmatpush.msra.mxu0 0.0
  %1070 = vmatpush.msra.mxu0 0.0
  %1071 = vmatpush.msra.mxu0 0.0
  %1072 = vmatpush.msra.mxu0 0.0
  %1073 = vmatpush.msra.mxu0 0.0
  %1074 = vmatpush.msra.mxu0 %v780
  %1075 = vmatpush.msra.mxu0 %v779
  %1076 = vmatpush.msra.mxu0 %v778
  %1077 = vmatpush.msra.mxu0 %v777
  %1078 = vmatmul.f32.gmra.mxu0 %v1060
  %v1079 = vpop.f32.mrf.mxu0
  %v1080 = vadd.f32 %v783, %v1079
  %1081 = vdwg.mxu0
  %v1082 = vadd.f32 %v1059, %v1080
  %v1083 = vxor.u32 %v1082, 2147483648
  %v1084 = vmul.f32 %v1083, 1.442695
  %v1085 = vpow.pop %v1084
  %v1086 = vadd.f32 %v1085, 1.0
  %v1087 = vrcp.pop %v1086
  %v1088 = vmul.f32 %v1086, %v1087
  %v1089 = vsub.f32 1.0, %v1088
  %v1090 = vmul.f32 %v1087, %v1089
  %v1091 = vadd.f32 %v1087, %v1090
  %vm1092 = vweird.f32 %v1086
  %vm1093 = vweird.f32 %v1087
  %vm1094 = vmor %vm1092, %vm1093
  %v1095 = vsel %vm1094, %v1087, %v1091
  %v1096 = vand.u32 2147483647, %v1086
  %vm1097 = vcmp.eq.f32.partialorder %v1096, 8.507059e+37
  %v1098 = vand.u32 %v1086, 2147483648
  %v1099 = vor.u32 1.1754944e-38, %v1098
  %v1100 = vsel %vm1097, %v1099, %v1095
  %v1101 = vmul.f32 1.0, %v1100
  %1103 = vrot.lane.b32.xlu0 %v1080, 64
  %v1104 = vpop.permute.xlu0 %1103
  %v1106 = vmul.f32 %v1101, %v1104
  %1108 = vrot.lane.b32.xlu0 %v1106, 64
  %v1109 = vpop.permute.xlu0 %1108
  %v1111 = vadd.f32 %v1059, %v1109
  %v1112 = vtanh.pop %v1111
  %v1113 = vsub.f32 1.0, %v1101
  %1115 = vrot.lane.b32.xlu0 %v1112, 96
  %v1116 = vpop.permute.xlu0 %1115
  %v1118 = vmul.f32 %v1113, %v1116
  %v1119 = vmul.f32 %v1101, %v1053
  %v1120 = vadd.f32 %v1118, %v1119
  %1122 = vrot.lane.b32.xlu0 %v1120, 96
  %v1123 = vpop.permute.xlu0 %1122
  %1125 = vst.msk [vmem:[%s479] sm:$0xff] %vm134, %v1123
  %v1126 = vld [vmem:[%s481] sm:$0xff]
  %v1127 = vsel %vm134, %v1123, 0
  %1129 = vmatpush.msra.mxu0 0.0
  %1130 = vmatpush.msra.mxu0 0.0
  %1131 = vmatpush.msra.mxu0 0.0
  %1132 = vmatpush.msra.mxu0 0.0
  %1133 = vmatpush.msra.mxu0 0.0
  %1134 = vmatpush.msra.mxu0 0.0
  %1135 = vmatpush.msra.mxu0 0.0
  %1136 = vmatpush.msra.mxu0 0.0
  %1137 = vmatpush.msra.mxu0 0.0
  %1138 = vmatpush.msra.mxu0 0.0
  %1139 = vmatpush.msra.mxu0 0.0
  %1140 = vmatpush.msra.mxu0 0.0
  %1141 = vmatpush.msra.mxu0 %v780
  %1142 = vmatpush.msra.mxu0 %v779
  %1143 = vmatpush.msra.mxu0 %v778
  %1144 = vmatpush.msra.mxu0 %v777
  %1145 = vmatmul.f32.gmra.mxu0 %v1127
  %v1146 = vpop.f32.mrf.mxu0
  %v1147 = vadd.f32 %v783, %v1146
  %1148 = vdwg.mxu0
  %v1149 = vadd.f32 %v1126, %v1147
  %v1150 = vxor.u32 %v1149, 2147483648
  %v1151 = vmul.f32 %v1150, 1.442695
  %v1152 = vpow.pop %v1151
  %v1153 = vadd.f32 %v1152, 1.0
  %v1154 = vrcp.pop %v1153
  %v1155 = vmul.f32 %v1153, %v1154
  %v1156 = vsub.f32 1.0, %v1155
  %v1157 = vmul.f32 %v1154, %v1156
  %v1158 = vadd.f32 %v1154, %v1157
  %vm1159 = vweird.f32 %v1153
  %vm1160 = vweird.f32 %v1154
  %vm1161 = vmor %vm1159, %vm1160
  %v1162 = vsel %vm1161, %v1154, %v1158
  %v1163 = vand.u32 2147483647, %v1153
  %vm1164 = vcmp.eq.f32.partialorder %v1163, 8.507059e+37
  %v1165 = vand.u32 %v1153, 2147483648
  %v1166 = vor.u32 1.1754944e-38, %v1165
  %v1167 = vsel %vm1164, %v1166, %v1162
  %v1168 = vmul.f32 1.0, %v1167
  %1170 = vrot.lane.b32.xlu0 %v1147, 64
  %v1171 = vpop.permute.xlu0 %1170
  %v1173 = vmul.f32 %v1168, %v1171
  %1175 = vrot.lane.b32.xlu0 %v1173, 64
  %v1176 = vpop.permute.xlu0 %1175
  %v1178 = vadd.f32 %v1126, %v1176
  %v1179 = vtanh.pop %v1178
  %v1180 = vsub.f32 1.0, %v1168
  %1182 = vrot.lane.b32.xlu0 %v1179, 96
  %v1183 = vpop.permute.xlu0 %1182
  %v1185 = vmul.f32 %v1180, %v1183
  %v1186 = vmul.f32 %v1168, %v1120
  %v1187 = vadd.f32 %v1185, %v1186
  %1189 = vrot.lane.b32.xlu0 %v1187, 96
  %v1190 = vpop.permute.xlu0 %1189
  %1192 = vst.msk [vmem:[%s548] sm:$0xff] %vm134, %v1190
  %v1193 = vld [vmem:[%s550] sm:$0xff]
  %v1194 = vsel %vm134, %v1190, 0
  %1196 = vmatpush.msra.mxu0 0.0
  %1197 = vmatpush.msra.mxu0 0.0
  %1198 = vmatpush.msra.mxu0 0.0
  %1199 = vmatpush.msra.mxu0 0.0
  %1200 = vmatpush.msra.mxu0 0.0
  %1201 = vmatpush.msra.mxu0 0.0
  %1202 = vmatpush.msra.mxu0 0.0
  %1203 = vmatpush.msra.mxu0 0.0
  %1204 = vmatpush.msra.mxu0 0.0
  %1205 = vmatpush.msra.mxu0 0.0
  %1206 = vmatpush.msra.mxu0 0.0
  %1207 = vmatpush.msra.mxu0 0.0
  %1208 = vmatpush.msra.mxu0 %v780
  %1209 = vmatpush.msra.mxu0 %v779
  %1210 = vmatpush.msra.mxu0 %v778
  %1211 = vmatpush.msra.mxu0 %v777
  %1212 = vmatmul.f32.gmra.mxu0 %v1194
  %v1213 = vpop.f32.mrf.mxu0
  %v1214 = vadd.f32 %v783, %v1213
  %1215 = vdwg.mxu0
  %v1216 = vadd.f32 %v1193, %v1214
  %v1217 = vxor.u32 %v1216, 2147483648
  %v1218 = vmul.f32 %v1217, 1.442695
  %v1219 = vpow.pop %v1218
  %v1220 = vadd.f32 %v1219, 1.0
  %v1221 = vrcp.pop %v1220
  %v1222 = vmul.f32 %v1220, %v1221
  %v1223 = vsub.f32 1.0, %v1222
  %v1224 = vmul.f32 %v1221, %v1223
  %v1225 = vadd.f32 %v1221, %v1224
  %vm1226 = vweird.f32 %v1220
  %vm1227 = vweird.f32 %v1221
  %vm1228 = vmor %vm1226, %vm1227
  %v1229 = vsel %vm1228, %v1221, %v1225
  %v1230 = vand.u32 2147483647, %v1220
  %vm1231 = vcmp.eq.f32.partialorder %v1230, 8.507059e+37
  %v1232 = vand.u32 %v1220, 2147483648
  %v1233 = vor.u32 1.1754944e-38, %v1232
  %v1234 = vsel %vm1231, %v1233, %v1229
  %v1235 = vmul.f32 1.0, %v1234
  %1237 = vrot.lane.b32.xlu0 %v1214, 64
  %v1238 = vpop.permute.xlu0 %1237
  %v1240 = vmul.f32 %v1235, %v1238
  %1242 = vrot.lane.b32.xlu0 %v1240, 64
  %v1243 = vpop.permute.xlu0 %1242
  %v1245 = vadd.f32 %v1193, %v1243
  %v1246 = vtanh.pop %v1245
  %v1247 = vsub.f32 1.0, %v1235
  %1249 = vrot.lane.b32.xlu0 %v1246, 96
  %v1250 = vpop.permute.xlu0 %1249
  %v1252 = vmul.f32 %v1247, %v1250
  %v1253 = vmul.f32 %v1235, %v1187
  %v1254 = vadd.f32 %v1252, %v1253
  %1256 = vrot.lane.b32.xlu0 %v1254, 96
  %v1257 = vpop.permute.xlu0 %1256
  %1259 = vst.msk [vmem:[%s617] sm:$0xff] %vm134, %v1257
  %v1260 = vld [vmem:[%s619] sm:$0xff]
  %v1261 = vsel %vm134, %v1257, 0
  %1263 = vmatpush.msra.mxu0 0.0
  %1264 = vmatpush.msra.mxu0 0.0
  %1265 = vmatpush.msra.mxu0 0.0
  %1266 = vmatpush.msra.mxu0 0.0
  %1267 = vmatpush.msra.mxu0 0.0
  %1268 = vmatpush.msra.mxu0 0.0
  %1269 = vmatpush.msra.mxu0 0.0
  %1270 = vmatpush.msra.mxu0 0.0
  %1271 = vmatpush.msra.mxu0 0.0
  %1272 = vmatpush.msra.mxu0 0.0
  %1273 = vmatpush.msra.mxu0 0.0
  %1274 = vmatpush.msra.mxu0 0.0
  %1275 = vmatpush.msra.mxu0 %v780
  %1276 = vmatpush.msra.mxu0 %v779
  %1277 = vmatpush.msra.mxu0 %v778
  %1278 = vmatpush.msra.mxu0 %v777
  %1279 = vmatmul.f32.gmra.mxu0 %v1261
  %v1280 = vpop.f32.mrf.mxu0
  %v1281 = vadd.f32 %v783, %v1280
  %1282 = vdwg.mxu0
  %v1283 = vadd.f32 %v1260, %v1281
  %v1284 = vxor.u32 %v1283, 2147483648
  %v1285 = vmul.f32 %v1284, 1.442695
  %v1286 = vpow.pop %v1285
  %v1287 = vadd.f32 %v1286, 1.0
  %v1288 = vrcp.pop %v1287
  %v1289 = vmul.f32 %v1287, %v1288
  %v1290 = vsub.f32 1.0, %v1289
  %v1291 = vmul.f32 %v1288, %v1290
  %v1292 = vadd.f32 %v1288, %v1291
  %vm1293 = vweird.f32 %v1287
  %vm1294 = vweird.f32 %v1288
  %vm1295 = vmor %vm1293, %vm1294
  %v1296 = vsel %vm1295, %v1288, %v1292
  %v1297 = vand.u32 2147483647, %v1287
  %vm1298 = vcmp.eq.f32.partialorder %v1297, 8.507059e+37
  %v1299 = vand.u32 %v1287, 2147483648
  %v1300 = vor.u32 1.1754944e-38, %v1299
  %v1301 = vsel %vm1298, %v1300, %v1296
  %v1302 = vmul.f32 1.0, %v1301
  %1304 = vrot.lane.b32.xlu0 %v1281, 64
  %v1305 = vpop.permute.xlu0 %1304
  %v1307 = vmul.f32 %v1302, %v1305
  %1309 = vrot.lane.b32.xlu0 %v1307, 64
  %v1310 = vpop.permute.xlu0 %1309
  %v1312 = vadd.f32 %v1260, %v1310
  %v1313 = vtanh.pop %v1312
  %v1314 = vsub.f32 1.0, %v1302
  %1316 = vrot.lane.b32.xlu0 %v1313, 96
  %v1317 = vpop.permute.xlu0 %1316
  %v1319 = vmul.f32 %v1314, %v1317
  %v1320 = vmul.f32 %v1302, %v1254
  %v1321 = vadd.f32 %v1319, %v1320
  %1323 = vrot.lane.b32.xlu0 %v1321, 96
  %v1324 = vpop.permute.xlu0 %1323
  %1326 = vst.msk [vmem:[%s686] sm:$0xff] %vm134, %v1324
  %v1327 = vld [vmem:[#allocation3] sm:$0xff]
  %v1328 = vld [vmem:[#allocation3 + $0x8] sm:$0xff]
  %v1329 = vld [vmem:[#allocation3 + $0x10] sm:$0xff]
  %v1330 = vld [vmem:[#allocation3 + $0x18] sm:$0xff]
  %v1331 = vld [vmem:[#allocation3 + $0x20] sm:$0xff]
  %v1332 = vld [vmem:[#allocation3 + $0x28] sm:$0xff]
  %v1333 = vld [vmem:[#allocation3 + $0x30] sm:$0xff]
  %v1334 = vld [vmem:[#allocation3 + $0x38] sm:$0xff]
  %v1335 = vld [vmem:[%s10] sm:$0xff]
  %v1336 = vld [vmem:[%s10 + $0x8] sm:$0xff]
  %v1337 = vld [vmem:[%s10 + $0x10] sm:$0xff]
  %v1338 = vld [vmem:[%s10 + $0x18] sm:$0xff]
  %v1339 = vld [vmem:[%s11] sm:$0x1]
  %v1341 = vperm.slane %v1339, 0
  %v1344 = vsel %vm134, %v1327, 0
  %v1347 = vsel %vm134, %v1328, 0
  %v1350 = vsel %vm134, %v1329, 0
  %v1353 = vsel %vm134, %v1330, 0
  %v1356 = vsel %vm134, %v1331, 0
  %v1359 = vsel %vm134, %v1332, 0
  %v1362 = vsel %vm134, %v1333, 0
  %v1365 = vsel %vm134, %v1334, 0
  %1367 = vmatpush.msra.mxu0 0.0
  %1368 = vmatpush.msra.mxu0 0.0
  %1369 = vmatpush.msra.mxu0 0.0
  %1370 = vmatpush.msra.mxu0 0.0
  %1371 = vmatpush.msra.mxu0 0.0
  %1372 = vmatpush.msra.mxu0 0.0
  %1373 = vmatpush.msra.mxu0 0.0
  %1374 = vmatpush.msra.mxu0 0.0
  %1375 = vmatpush.msra.mxu0 0.0
  %1376 = vmatpush.msra.mxu0 0.0
  %1377 = vmatpush.msra.mxu0 0.0
  %1378 = vmatpush.msra.mxu0 0.0
  %1379 = vmatpush.msra.mxu0 %v1338
  %1380 = vmatpush.msra.mxu0 %v1337
  %1381 = vmatpush.msra.mxu0 %v1336
  %1382 = vmatpush.msra.mxu0 %v1335
  %1383 = vmatmul.f32.gmra.mxu0 %v1344
  %v1384 = vpop.f32.mrf.mxu0
  %v1385 = vadd.f32 %v1341, %v1384
  %1386 = vmatmul.f32.gmra.mxu0 %v1347
  %v1387 = vpop.f32.mrf.mxu0
  %v1388 = vadd.f32 %v1341, %v1387
  %1389 = vmatmul.f32.gmra.mxu0 %v1350
  %v1390 = vpop.f32.mrf.mxu0
  %v1391 = vadd.f32 %v1341, %v1390
  %1392 = vmatmul.f32.gmra.mxu0 %v1353
  %v1393 = vpop.f32.mrf.mxu0
  %v1394 = vadd.f32 %v1341, %v1393
  %1395 = vmatmul.f32.gmra.mxu0 %v1356
  %v1396 = vpop.f32.mrf.mxu0
  %v1397 = vadd.f32 %v1341, %v1396
  %1398 = vmatmul.f32.gmra.mxu0 %v1359
  %v1399 = vpop.f32.mrf.mxu0
  %v1400 = vadd.f32 %v1341, %v1399
  %1401 = vmatmul.f32.gmra.mxu0 %v1362
  %v1402 = vpop.f32.mrf.mxu0
  %v1403 = vadd.f32 %v1341, %v1402
  %1404 = vmatmul.f32.gmra.mxu0 %v1365
  %v1405 = vpop.f32.mrf.mxu0
  %v1406 = vadd.f32 %v1341, %v1405
  %1407 = vdwg.mxu0
  %v1408 = vmax.f32 %v1385, 0.0
  %v1409 = vmax.f32 %v1388, 0.0
  %v1410 = vmax.f32 %v1391, 0.0
  %v1411 = vmax.f32 %v1394, 0.0
  %v1412 = vmax.f32 %v1397, 0.0
  %v1413 = vmax.f32 %v1400, 0.0
  %v1414 = vmax.f32 %v1403, 0.0
  %v1415 = vmax.f32 %v1406, 0.0
  %v1416 = vld [vmem:[%s12] sm:$0xff]
  %v1417 = vld [vmem:[%s12 + $0x8] sm:$0xff]
  %v1418 = vld [vmem:[%s12 + $0x10] sm:$0xff]
  %v1419 = vld [vmem:[%s12 + $0x18] sm:$0xff]
  %v1420 = vld [vmem:[%s13] sm:$0x1]
  %v1422 = vperm.slane %v1420, 0
  %v1425 = vsel %vm134, %v1408, 0
  %v1428 = vsel %vm134, %v1409, 0
  %v1431 = vsel %vm134, %v1410, 0
  %v1434 = vsel %vm134, %v1411, 0
  %v1437 = vsel %vm134, %v1412, 0
  %v1440 = vsel %vm134, %v1413, 0
  %v1443 = vsel %vm134, %v1414, 0
  %v1446 = vsel %vm134, %v1415, 0
  %1448 = vmatpush.msra.mxu0 0.0
  %1449 = vmatpush.msra.mxu0 0.0
  %1450 = vmatpush.msra.mxu0 0.0
  %1451 = vmatpush.msra.mxu0 0.0
  %1452 = vmatpush.msra.mxu0 0.0
  %1453 = vmatpush.msra.mxu0 0.0
  %1454 = vmatpush.msra.mxu0 0.0
  %1455 = vmatpush.msra.mxu0 0.0
  %1456 = vmatpush.msra.mxu0 0.0
  %1457 = vmatpush.msra.mxu0 0.0
  %1458 = vmatpush.msra.mxu0 0.0
  %1459 = vmatpush.msra.mxu0 0.0
  %1460 = vmatpush.msra.mxu0 %v1419
  %1461 = vmatpush.msra.mxu0 %v1418
  %1462 = vmatpush.msra.mxu0 %v1417
  %1463 = vmatpush.msra.mxu0 %v1416
  %1464 = vmatmul.f32.gmra.mxu0 %v1425
  %v1465 = vpop.f32.mrf.mxu0
  %v1466 = vadd.f32 %v1422, %v1465
  %1467 = vmatmul.f32.gmra.mxu0 %v1428
  %v1468 = vpop.f32.mrf.mxu0
  %v1469 = vadd.f32 %v1422, %v1468
  %1470 = vmatmul.f32.gmra.mxu0 %v1431
  %v1471 = vpop.f32.mrf.mxu0
  %v1472 = vadd.f32 %v1422, %v1471
  %1473 = vmatmul.f32.gmra.mxu0 %v1434
  %v1474 = vpop.f32.mrf.mxu0
  %v1475 = vadd.f32 %v1422, %v1474
  %1476 = vmatmul.f32.gmra.mxu0 %v1437
  %v1477 = vpop.f32.mrf.mxu0
  %v1478 = vadd.f32 %v1422, %v1477
  %1479 = vmatmul.f32.gmra.mxu0 %v1440
  %v1480 = vpop.f32.mrf.mxu0
  %v1481 = vadd.f32 %v1422, %v1480
  %1482 = vmatmul.f32.gmra.mxu0 %v1443
  %v1483 = vpop.f32.mrf.mxu0
  %v1484 = vadd.f32 %v1422, %v1483
  %1485 = vmatmul.f32.gmra.mxu0 %v1446
  %v1486 = vpop.f32.mrf.mxu0
  %v1487 = vadd.f32 %v1422, %v1486
  %1488 = vdwg.mxu0
  %1489 = vst [vmem:[%s14] sm:$0xff] %v1466
  %1490 = vst [vmem:[%s14 + $0x8] sm:$0xff] %v1469
  %1491 = vst [vmem:[%s14 + $0x10] sm:$0xff] %v1472
  %1492 = vst [vmem:[%s14 + $0x18] sm:$0xff] %v1475
  %1493 = vst [vmem:[%s14 + $0x20] sm:$0xff] %v1478
  %1494 = vst [vmem:[%s14 + $0x28] sm:$0xff] %v1481
  %1495 = vst [vmem:[%s14 + $0x30] sm:$0xff] %v1484
  %1496 = vst [vmem:[%s14 + $0x38] sm:$0xff] %v1487
  // Predicated region
  $region58: #{gru_model_forward.1} parent=0 // pred_check
    _
  $region59: #{gru_model_forward.1} parent=0 // pred_check_branch
    %1498 = sbr.rel (0) target = $region61
  $region60: #{gru_model_forward.1} parent=0 // pred_region
    _
  $region61: #{gru_model_forward.1} parent=0 // pred_fallthru
    _
  // Predicated region
  $region62: #{gru_model_forward.1} parent=0 // pred_check
    _
  $region63: #{gru_model_forward.1} parent=0 // pred_check_branch
    %1500 = sbr.rel (0) target = $region65
  $region64: #{gru_model_forward.1} parent=0 // pred_region
    _
  $region65: #{gru_model_forward.1} parent=0 // pred_fallthru
    _

</llo_original>
